<compile_context>
chip_gen: v6e
topology: v6e:2x2x1
jax: 0.10.0
libtpu: 0.0.40
codegen_flags: <defaults>
</compile_context>

<pallas_src>
import jax
import jax.numpy as jnp
from jax.experimental import pallas as pl
from jax.experimental.pallas import tpu as pltpu


def _hardswish(x):
    # x * relu6(x + 3) / 6  (exact PyTorch nn.Hardswish semantics)
    return x * jnp.clip(x + 3.0, 0.0, 6.0) * (1.0 / 6.0)


def critic_twin_kernel(state_ref, action_ref,
                       w1s_ref, w1a_ref, b1_ref,
                       w2_ref, b2_ref,
                       wqa_ref, bqa_ref,
                       wqb_ref, bqb_ref,
                       out_ref):
    f32 = jnp.float32
    bf16 = jnp.bfloat16

    # net_sa layer 1: cat(state, action) @ w1 == state @ w1s + action @ w1a
    h = (jnp.dot(state_ref[...], w1s_ref[...], preferred_element_type=f32)
         + jnp.dot(action_ref[...], w1a_ref[...], preferred_element_type=f32)
         + b1_ref[...])
    h = jnp.maximum(h, 0.0)

    # net_sa layer 2: Linear -> ReLU
    h = jnp.dot(h.astype(bf16), w2_ref[...], preferred_element_type=f32) + b2_ref[...]
    h = jnp.maximum(h, 0.0)

    # fused twin heads: single (TB, 2*mid) matmul + hardswish
    t = jnp.dot(h.astype(bf16), wqa_ref[...], preferred_element_type=f32) + bqa_ref[...]
    t = _hardswish(t)

    # block-diagonal head -> lane-packed (TB, 2): col 0 = q1, col 1 = q2
    q = jnp.dot(t.astype(bf16), wqb_ref[...], preferred_element_type=f32) + bqb_ref[...]
    out_ref[...] = q.astype(out_ref.dtype)


def init_params(key, state_dim, action_dim, mid_dim):
    """PyTorch nn.Linear default init (U[-1/sqrt(fan_in), +]); weights stored
    transposed as (in_features, out_features)."""
    def linear(k, fan_in, fan_out):
        kw, kb = jax.random.split(k)
        bound = 1.0 / jnp.sqrt(jnp.float32(fan_in))
        w = jax.random.uniform(kw, (fan_in, fan_out), jnp.float32, -bound, bound)
        b = jax.random.uniform(kb, (1, fan_out), jnp.float32, -bound, bound)
        return w, b

    keys = jax.random.split(key, 6)
    in_dim = state_dim + action_dim
    w1, b1 = linear(keys[0], in_dim, mid_dim)
    w2, b2 = linear(keys[1], mid_dim, mid_dim)
    wq1a, bq1a = linear(keys[2], mid_dim, mid_dim)
    wq1b, bq1b = linear(keys[3], mid_dim, 1)
    wq2a, bq2a = linear(keys[4], mid_dim, mid_dim)
    wq2b, bq2b = linear(keys[5], mid_dim, 1)
    return dict(w1=w1, b1=b1, w2=w2, b2=b2,
                wq1a=wq1a, bq1a=bq1a, wq1b=wq1b, bq1b=bq1b,
                wq2a=wq2a, bq2a=bq2a, wq2b=wq2b, bq2b=bq2b)


def pack_params(p, state_dim, mid_dim):
    """Kernel-side packing: split w1 by (state|action), fuse the twin heads,
    build the block-diagonal output head, cast matmul weights to bf16."""
    bf16 = jnp.bfloat16
    wqa = jnp.concatenate([p["wq1a"], p["wq2a"]], axis=1)          # (mid, 2*mid)
    bqa = jnp.concatenate([p["bq1a"], p["bq2a"]], axis=1)          # (1, 2*mid)
    wqb = jnp.zeros((2 * mid_dim, 2), jnp.float32)
    wqb = wqb.at[:mid_dim, 0].set(p["wq1b"][:, 0])
    wqb = wqb.at[mid_dim:, 1].set(p["wq2b"][:, 0])                 # block-diagonal
    bqb = jnp.concatenate([p["bq1b"], p["bq2b"]], axis=1)          # (1, 2)
    return dict(
        w1s=p["w1"][:state_dim].astype(bf16),
        w1a=p["w1"][state_dim:].astype(bf16),
        b1=p["b1"],
        w2=p["w2"].astype(bf16),
        b2=p["b2"],
        wqa=wqa.astype(bf16),
        bqa=bqa,
        wqb=wqb.astype(bf16),
        bqb=bqb,
    )


def critic_twin_forward(state, action, params, *, block_b=256):
    B, state_dim = state.shape
    action_dim = action.shape[1]

    TB = block_b
    n_blocks = pl.cdiv(B, TB)
    Bpad = n_blocks * TB
    if Bpad != B:
        state = jnp.pad(state, ((0, Bpad - B), (0, 0)))
        action = jnp.pad(action, ((0, Bpad - B), (0, 0)))
    state = state.astype(jnp.bfloat16)
    action = action.astype(jnp.bfloat16)

    weights = (params["w1s"], params["w1a"], params["b1"],
               params["w2"], params["b2"],
               params["wqa"], params["bqa"],
               params["wqb"], params["bqb"])

    def batch_spec(feat):
        return pl.BlockSpec((TB, feat), lambda i: (i, 0))

    resident_specs = [pl.BlockSpec(w.shape, lambda i: (0, 0)) for w in weights]

    out = pl.pallas_call(
        critic_twin_kernel,
        grid=(n_blocks,),
        in_specs=[batch_spec(state_dim), batch_spec(action_dim)] + resident_specs,
        out_specs=pl.BlockSpec((TB, 2), lambda i: (i, 0)),
        out_shape=jax.ShapeDtypeStruct((Bpad, 2), jnp.float32),
        compiler_params=pltpu.CompilerParams(
            dimension_semantics=("parallel",)),
    )(state, action, *weights)

    return out[:B, 0:1], out[:B, 1:2]


def _reference_forward(state, action, p):
    """Pure-JAX reference of the PyTorch module, using bf16 matmul operands
    with f32 accumulation to mirror the kernel's MXU precision."""
    def bdot(x, w):
        return jnp.dot(x.astype(jnp.bfloat16), w.astype(jnp.bfloat16),
                       preferred_element_type=jnp.float32)

    sa = jnp.concatenate([state, action], axis=1)
    h = jnp.maximum(bdot(sa, p["w1"]) + p["b1"], 0.0)
    h = jnp.maximum(bdot(h, p["w2"]) + p["b2"], 0.0)
    t1 = _hardswish(bdot(h, p["wq1a"]) + p["bq1a"])
    q1 = bdot(t1, p["wq1b"]) + p["bq1b"]
    t2 = _hardswish(bdot(h, p["wq2a"]) + p["bq2a"])
    q2 = bdot(t2, p["wq2b"]) + p["bq2b"]
    return q1, q2


if __name__ == "__main__":
    state_dim, action_dim, mid_dim = 8, 4, 32

    root = jax.random.PRNGKey(0)
    k_state, k_action, k_params = jax.random.split(root, 3)

    raw_params = init_params(k_params, state_dim, action_dim, mid_dim)
    packed_params = pack_params(raw_params, state_dim, mid_dim)

    fwd = jax.jit(critic_twin_forward)

    # Small case (single padded grid step).
    batch = 2
    state = jax.random.normal(k_state, (batch, state_dim), jnp.float32)
    action = jax.random.normal(k_action, (batch, action_dim), jnp.float32)
    q1, q2 = fwd(state, action, packed_params)
    q1 = jax.block_until_ready(q1)
    q2 = jax.block_until_ready(q2)
    q1_ref, q2_ref = _reference_forward(state, action, raw_params)
    assert q1.shape == (batch, 1) and q2.shape == (batch, 1)
    assert jnp.allclose(q1, q1_ref, atol=5e-3, rtol=5e-3)
    assert jnp.allclose(q2, q2_ref, atol=5e-3, rtol=5e-3)

    # Larger, non-multiple-of-tile batch (exercises the multi-step parallel grid).
    batch = 520
    state = jax.random.normal(k_state, (batch, state_dim), jnp.float32)
    action = jax.random.normal(k_action, (batch, action_dim), jnp.float32)
    q1, q2 = fwd(state, action, packed_params)
    q1 = jax.block_until_ready(q1)
    q2 = jax.block_until_ready(q2)
    q1_ref, q2_ref = _reference_forward(state, action, raw_params)
    assert q1.shape == (batch, 1) and q2.shape == (batch, 1)
    assert jnp.allclose(q1, q1_ref, atol=5e-3, rtol=5e-3)
    assert jnp.allclose(q2, q2_ref, atol=5e-3, rtol=5e-3)

    print("KERNEL_OK")
</pallas_src>

<mosaic_0001>
module attributes {stable_mosaic.version = 11 : i64} {
  func.func @critic_twin_kernel(%arg0: i32, %arg1: memref<256x8xbf16, #tpu.memory_space<vmem>>, %arg2: memref<256x4xbf16, #tpu.memory_space<vmem>>, %arg3: memref<8x32xbf16, #tpu.memory_space<vmem>>, %arg4: memref<4x32xbf16, #tpu.memory_space<vmem>>, %arg5: memref<1x32xf32, #tpu.memory_space<vmem>>, %arg6: memref<32x32xbf16, #tpu.memory_space<vmem>>, %arg7: memref<1x32xf32, #tpu.memory_space<vmem>>, %arg8: memref<32x64xbf16, #tpu.memory_space<vmem>>, %arg9: memref<1x64xf32, #tpu.memory_space<vmem>>, %arg10: memref<64x2xbf16, #tpu.memory_space<vmem>>, %arg11: memref<1x2xf32, #tpu.memory_space<vmem>>, %arg12: memref<256x2xf32, #tpu.memory_space<vmem>>) attributes {dimension_semantics = [#tpu.dimension_semantics<parallel>], iteration_bounds = array<i64: 1>, scalar_prefetch = 0 : i64, scratch_operands = 0 : i64, tpu.core_type = #tpu.core_type<tc>, window_params = [{transform_indices = @transform_0, window_bounds = array<i64: 256, 8>}, {transform_indices = @transform_1, window_bounds = array<i64: 256, 4>}, {pipeline_mode = #tpu.pipeline_mode<synchronous>, transform_indices = @transform_2, window_bounds = array<i64: 8, 32>}, {pipeline_mode = #tpu.pipeline_mode<synchronous>, transform_indices = @transform_3, window_bounds = array<i64: 4, 32>}, {pipeline_mode = #tpu.pipeline_mode<synchronous>, transform_indices = @transform_4, window_bounds = array<i64: 1, 32>}, {pipeline_mode = #tpu.pipeline_mode<synchronous>, transform_indices = @transform_5, window_bounds = array<i64: 32, 32>}, {pipeline_mode = #tpu.pipeline_mode<synchronous>, transform_indices = @transform_6, window_bounds = array<i64: 1, 32>}, {pipeline_mode = #tpu.pipeline_mode<synchronous>, transform_indices = @transform_7, window_bounds = array<i64: 32, 64>}, {pipeline_mode = #tpu.pipeline_mode<synchronous>, transform_indices = @transform_8, window_bounds = array<i64: 1, 64>}, {pipeline_mode = #tpu.pipeline_mode<synchronous>, transform_indices = @transform_9, window_bounds = array<i64: 64, 2>}, {pipeline_mode = #tpu.pipeline_mode<synchronous>, transform_indices = @transform_10, window_bounds = array<i64: 1, 2>}, {transform_indices = @transform_11, window_bounds = array<i64: 256, 2>}]} {
    %c0 = arith.constant 0 : index
    %c0_0 = arith.constant 0 : index
    %0 = vector.load %arg1[%c0, %c0_0] : memref<256x8xbf16, #tpu.memory_space<vmem>>, vector<256x8xbf16>
    %c0_1 = arith.constant 0 : index
    %c0_2 = arith.constant 0 : index
    %1 = vector.load %arg3[%c0_1, %c0_2] : memref<8x32xbf16, #tpu.memory_space<vmem>>, vector<8x32xbf16>
    %cst = arith.constant dense<0.000000e+00> : vector<256x32xf32>
    %2 = tpu.matmul %0, %1, %cst {dimension_numbers = #tpu.dot_dimension_numbers<[1], [0], [0], [1], [0, 0, 1, 1], [], []>} : vector<256x8xbf16>, vector<8x32xbf16>, vector<256x32xf32> -> vector<256x32xf32>
    %c0_3 = arith.constant 0 : index
    %c0_4 = arith.constant 0 : index
    %3 = vector.load %arg2[%c0_3, %c0_4] : memref<256x4xbf16, #tpu.memory_space<vmem>>, vector<256x4xbf16>
    %c0_5 = arith.constant 0 : index
    %c0_6 = arith.constant 0 : index
    %4 = vector.load %arg4[%c0_5, %c0_6] : memref<4x32xbf16, #tpu.memory_space<vmem>>, vector<4x32xbf16>
    %cst_7 = arith.constant dense<0.000000e+00> : vector<256x32xf32>
    %5 = tpu.matmul %3, %4, %cst_7 {dimension_numbers = #tpu.dot_dimension_numbers<[1], [0], [0], [1], [0, 0, 1, 1], [], []>} : vector<256x4xbf16>, vector<4x32xbf16>, vector<256x32xf32> -> vector<256x32xf32>
    %6 = arith.addf %2, %5 : vector<256x32xf32>
    %c0_8 = arith.constant 0 : index
    %c0_9 = arith.constant 0 : index
    %7 = vector.load %arg5[%c0_8, %c0_9] : memref<1x32xf32, #tpu.memory_space<vmem>>, vector<1x32xf32>
    %8 = vector.broadcast %7 : vector<1x32xf32> to vector<256x32xf32>
    %9 = arith.addf %6, %8 : vector<256x32xf32>
    %cst_10 = arith.constant 0.000000e+00 : f32
    %10 = vector.broadcast %cst_10 : f32 to vector<256x32xf32>
    %11 = arith.maximumf %9, %10 : vector<256x32xf32>
    %12 = arith.truncf %11 : vector<256x32xf32> to vector<256x32xbf16>
    %c0_11 = arith.constant 0 : index
    %c0_12 = arith.constant 0 : index
    %13 = vector.load %arg6[%c0_11, %c0_12] : memref<32x32xbf16, #tpu.memory_space<vmem>>, vector<32x32xbf16>
    %cst_13 = arith.constant dense<0.000000e+00> : vector<256x32xf32>
    %14 = tpu.matmul %12, %13, %cst_13 {dimension_numbers = #tpu.dot_dimension_numbers<[1], [0], [0], [1], [0, 0, 1, 1], [], []>} : vector<256x32xbf16>, vector<32x32xbf16>, vector<256x32xf32> -> vector<256x32xf32>
    %c0_14 = arith.constant 0 : index
    %c0_15 = arith.constant 0 : index
    %15 = vector.load %arg7[%c0_14, %c0_15] : memref<1x32xf32, #tpu.memory_space<vmem>>, vector<1x32xf32>
    %16 = vector.broadcast %15 : vector<1x32xf32> to vector<256x32xf32>
    %17 = arith.addf %14, %16 : vector<256x32xf32>
    %cst_16 = arith.constant 0.000000e+00 : f32
    %18 = vector.broadcast %cst_16 : f32 to vector<256x32xf32>
    %19 = arith.maximumf %17, %18 : vector<256x32xf32>
    %20 = arith.truncf %19 : vector<256x32xf32> to vector<256x32xbf16>
    %c0_17 = arith.constant 0 : index
    %c0_18 = arith.constant 0 : index
    %21 = vector.load %arg8[%c0_17, %c0_18] : memref<32x64xbf16, #tpu.memory_space<vmem>>, vector<32x64xbf16>
    %cst_19 = arith.constant dense<0.000000e+00> : vector<256x64xf32>
    %22 = tpu.matmul %20, %21, %cst_19 {dimension_numbers = #tpu.dot_dimension_numbers<[1], [0], [0], [1], [0, 0, 1, 1], [], []>} : vector<256x32xbf16>, vector<32x64xbf16>, vector<256x64xf32> -> vector<256x64xf32>
    %c0_20 = arith.constant 0 : index
    %c0_21 = arith.constant 0 : index
    %23 = vector.load %arg9[%c0_20, %c0_21] : memref<1x64xf32, #tpu.memory_space<vmem>>, vector<1x64xf32>
    %24 = vector.broadcast %23 : vector<1x64xf32> to vector<256x64xf32>
    %25 = arith.addf %22, %24 : vector<256x64xf32>
    %cst_22 = arith.constant 3.000000e+00 : f32
    %26 = vector.broadcast %cst_22 : f32 to vector<256x64xf32>
    %27 = arith.addf %25, %26 : vector<256x64xf32>
    %cst_23 = arith.constant 0.000000e+00 : f32
    %cst_24 = arith.constant 6.000000e+00 : f32
    %28 = vector.broadcast %cst_23 : f32 to vector<256x64xf32>
    %29 = arith.maximumf %28, %27 : vector<256x64xf32>
    %30 = vector.broadcast %cst_24 : f32 to vector<256x64xf32>
    %31 = arith.minimumf %30, %29 : vector<256x64xf32>
    %32 = arith.mulf %25, %31 : vector<256x64xf32>
    %cst_25 = arith.constant 0.166666672 : f32
    %33 = vector.broadcast %cst_25 : f32 to vector<256x64xf32>
    %34 = arith.mulf %32, %33 : vector<256x64xf32>
    %35 = arith.truncf %34 : vector<256x64xf32> to vector<256x64xbf16>
    %c0_26 = arith.constant 0 : index
    %c0_27 = arith.constant 0 : index
    %36 = vector.load %arg10[%c0_26, %c0_27] : memref<64x2xbf16, #tpu.memory_space<vmem>>, vector<64x2xbf16>
    %cst_28 = arith.constant dense<0.000000e+00> : vector<256x2xf32>
    %37 = tpu.matmul %35, %36, %cst_28 {dimension_numbers = #tpu.dot_dimension_numbers<[1], [0], [0], [1], [0, 0, 1, 1], [], []>} : vector<256x64xbf16>, vector<64x2xbf16>, vector<256x2xf32> -> vector<256x2xf32>
    %c0_29 = arith.constant 0 : index
    %c0_30 = arith.constant 0 : index
    %38 = vector.load %arg11[%c0_29, %c0_30] : memref<1x2xf32, #tpu.memory_space<vmem>>, vector<1x2xf32>
    %39 = vector.broadcast %38 : vector<1x2xf32> to vector<256x2xf32>
    %40 = arith.addf %37, %39 : vector<256x2xf32>
    %c0_31 = arith.constant 0 : index
    %c0_32 = arith.constant 0 : index
    %41 = vector.load %arg12[%c0_31, %c0_32] : memref<256x2xf32, #tpu.memory_space<vmem>>, vector<256x2xf32>
    tpu.vector_store %arg12[%c0_31, %c0_32], %40 {strides = array<i32>} : memref<256x2xf32, #tpu.memory_space<vmem>>, vector<256x2xf32>,
    return
  }
  func.func @transform_0(%arg0: i32) -> (i32, i32) {
    %c0_i32 = arith.constant 0 : i32
    %c0_i32_0 = arith.constant 0 : i32
    return %arg0, %c0_i32 : i32, i32
  }
  func.func @transform_1(%arg0: i32) -> (i32, i32) {
    %c0_i32 = arith.constant 0 : i32
    %c0_i32_0 = arith.constant 0 : i32
    return %arg0, %c0_i32 : i32, i32
  }
  func.func @transform_2(%arg0: i32) -> (i32, i32) {
    %c0_i32 = arith.constant 0 : i32
    %c0_i32_0 = arith.constant 0 : i32
    %c0_i32_1 = arith.constant 0 : i32
    return %c0_i32, %c0_i32_0 : i32, i32
  }
  func.func @transform_3(%arg0: i32) -> (i32, i32) {
    %c0_i32 = arith.constant 0 : i32
    %c0_i32_0 = arith.constant 0 : i32
    %c0_i32_1 = arith.constant 0 : i32
    return %c0_i32, %c0_i32_0 : i32, i32
  }
  func.func @transform_4(%arg0: i32) -> (i32, i32) {
    %c0_i32 = arith.constant 0 : i32
    %c0_i32_0 = arith.constant 0 : i32
    %c0_i32_1 = arith.constant 0 : i32
    return %c0_i32, %c0_i32_0 : i32, i32
  }
  func.func @transform_5(%arg0: i32) -> (i32, i32) {
    %c0_i32 = arith.constant 0 : i32
    %c0_i32_0 = arith.constant 0 : i32
    %c0_i32_1 = arith.constant 0 : i32
    return %c0_i32, %c0_i32_0 : i32, i32
  }
  func.func @transform_6(%arg0: i32) -> (i32, i32) {
    %c0_i32 = arith.constant 0 : i32
    %c0_i32_0 = arith.constant 0 : i32
    %c0_i32_1 = arith.constant 0 : i32
    return %c0_i32, %c0_i32_0 : i32, i32
  }
  func.func @transform_7(%arg0: i32) -> (i32, i32) {
    %c0_i32 = arith.constant 0 : i32
    %c0_i32_0 = arith.constant 0 : i32
    %c0_i32_1 = arith.constant 0 : i32
    return %c0_i32, %c0_i32_0 : i32, i32
  }
  func.func @transform_8(%arg0: i32) -> (i32, i32) {
    %c0_i32 = arith.constant 0 : i32
    %c0_i32_0 = arith.constant 0 : i32
    %c0_i32_1 = arith.constant 0 : i32
    return %c0_i32, %c0_i32_0 : i32, i32
  }
  func.func @transform_9(%arg0: i32) -> (i32, i32) {
    %c0_i32 = arith.constant 0 : i32
    %c0_i32_0 = arith.constant 0 : i32
    %c0_i32_1 = arith.constant 0 : i32
    return %c0_i32, %c0_i32_0 : i32, i32
  }
  func.func @transform_10(%arg0: i32) -> (i32, i32) {
    %c0_i32 = arith.constant 0 : i32
    %c0_i32_0 = arith.constant 0 : i32
    %c0_i32_1 = arith.constant 0 : i32
    return %c0_i32, %c0_i32_0 : i32, i32
  }
  func.func @transform_11(%arg0: i32) -> (i32, i32) {
    %c0_i32 = arith.constant 0 : i32
    %c0_i32_0 = arith.constant 0 : i32
    return %arg0, %c0_i32 : i32, i32
  }
}

</mosaic_0001>

<llo_original>
// kernel: critic_twin_forward.1
$region0: #{critic_twin_forward.1}
  #allocation0 [shape = 'u32[]', space=smem, size = 0x4, offset = 0x4, fixed_abs, tag = 'smem constant byte address 0x4 - core index']
  #allocation1 [shape = 'u32[144,128]{1,0:T(1,128)}', space=vmem, size = 0x12000, scoped, tag = 'internal scratch']
  %s0 = inlined_call_operand.vmem [shape: bf16[256,8], index: 0, kind: input, shape index: {}]
  %s1 = inlined_call_operand.vmem [shape: bf16[256,4], index: 1, kind: input, shape index: {}]
  %s2 = inlined_call_operand.vmem [shape: bf16[8,32], index: 2, kind: input, shape index: {}]
  %s3 = inlined_call_operand.vmem [shape: bf16[4,32], index: 3, kind: input, shape index: {}]
  %s4 = inlined_call_operand.vmem [shape: f32[1,32], index: 4, kind: input, shape index: {}]
  %s5 = inlined_call_operand.vmem [shape: bf16[32,32], index: 5, kind: input, shape index: {}]
  %s6 = inlined_call_operand.vmem [shape: f32[1,32], index: 6, kind: input, shape index: {}]
  %s7 = inlined_call_operand.vmem [shape: bf16[32,64], index: 7, kind: input, shape index: {}]
  %s8 = inlined_call_operand.vmem [shape: f32[1,64], index: 8, kind: input, shape index: {}]
  %s9 = inlined_call_operand.vmem [shape: bf16[64,2], index: 9, kind: input, shape index: {}]
  %s10 = inlined_call_operand.vmem [shape: f32[1,2], index: 10, kind: input, shape index: {}]
  %s11 = inlined_call_operand.vmem [shape: f32[256,2], index: 11, kind: output, shape index: {}]
  %s12 = sld [smem:[#allocation0]]
  $region54: #{critic_twin_forward.1} parent=0
    _
  %s14 = ssub.s32 1, %s12
  %s15 = scalar_select 0, %s14, %s12
  // Predicated region
  $region2: #{critic_twin_forward.1} parent=0 // pred_check
    _
  $region3: #{critic_twin_forward.1} parent=0 // pred_check_branch
    %17 = sbr.rel (0) target = $region5
  $region4: #{critic_twin_forward.1} parent=0 // pred_region
    _
  $region5: #{critic_twin_forward.1} parent=0 // pred_fallthru
    _
  // Predicated region
  $region6: #{critic_twin_forward.1} parent=0 // pred_check
    _
  $region7: #{critic_twin_forward.1} parent=0 // pred_check_branch
    %19 = sbr.rel (0) target = $region9
  $region8: #{critic_twin_forward.1} parent=0 // pred_region
    _
  $region9: #{critic_twin_forward.1} parent=0 // pred_fallthru
    _
  // Predicated region
  $region10: #{critic_twin_forward.1} parent=0 // pred_check
    _
  $region11: #{critic_twin_forward.1} parent=0 // pred_check_branch
    %21 = sbr.rel (0) target = $region13
  $region12: #{critic_twin_forward.1} parent=0 // pred_region
    _
  $region13: #{critic_twin_forward.1} parent=0 // pred_fallthru
    _
  // Predicated region
  $region14: #{critic_twin_forward.1} parent=0 // pred_check
    _
  $region15: #{critic_twin_forward.1} parent=0 // pred_check_branch
    %23 = sbr.rel (0) target = $region17
  $region16: #{critic_twin_forward.1} parent=0 // pred_region
    _
  $region17: #{critic_twin_forward.1} parent=0 // pred_fallthru
    _
  // Predicated region
  $region18: #{critic_twin_forward.1} parent=0 // pred_check
    _
  $region19: #{critic_twin_forward.1} parent=0 // pred_check_branch
    %25 = sbr.rel (0) target = $region21
  $region20: #{critic_twin_forward.1} parent=0 // pred_region
    _
  $region21: #{critic_twin_forward.1} parent=0 // pred_fallthru
    _
  // Predicated region
  $region22: #{critic_twin_forward.1} parent=0 // pred_check
    _
  $region23: #{critic_twin_forward.1} parent=0 // pred_check_branch
    %27 = sbr.rel (0) target = $region25
  $region24: #{critic_twin_forward.1} parent=0 // pred_region
    _
  $region25: #{critic_twin_forward.1} parent=0 // pred_fallthru
    _
  // Predicated region
  $region26: #{critic_twin_forward.1} parent=0 // pred_check
    _
  $region27: #{critic_twin_forward.1} parent=0 // pred_check_branch
    %29 = sbr.rel (0) target = $region29
  $region28: #{critic_twin_forward.1} parent=0 // pred_region
    _
  $region29: #{critic_twin_forward.1} parent=0 // pred_fallthru
    _
  // Predicated region
  $region30: #{critic_twin_forward.1} parent=0 // pred_check
    _
  $region31: #{critic_twin_forward.1} parent=0 // pred_check_branch
    %31 = sbr.rel (0) target = $region33
  $region32: #{critic_twin_forward.1} parent=0 // pred_region
    _
  $region33: #{critic_twin_forward.1} parent=0 // pred_fallthru
    _
  // Predicated region
  $region34: #{critic_twin_forward.1} parent=0 // pred_check
    _
  $region35: #{critic_twin_forward.1} parent=0 // pred_check_branch
    %33 = sbr.rel (0) target = $region37
  $region36: #{critic_twin_forward.1} parent=0 // pred_region
    _
  $region37: #{critic_twin_forward.1} parent=0 // pred_fallthru
    _
  // Predicated region
  $region38: #{critic_twin_forward.1} parent=0 // pred_check
    _
  $region39: #{critic_twin_forward.1} parent=0 // pred_check_branch
    %35 = sbr.rel (0) target = $region41
  $region40: #{critic_twin_forward.1} parent=0 // pred_region
    _
  $region41: #{critic_twin_forward.1} parent=0 // pred_fallthru
    _
  // Predicated region
  $region42: #{critic_twin_forward.1} parent=0 // pred_check
    _
  $region43: #{critic_twin_forward.1} parent=0 // pred_check_branch
    %37 = sbr.rel (0) target = $region45
  $region44: #{critic_twin_forward.1} parent=0 // pred_region
    _
  $region45: #{critic_twin_forward.1} parent=0 // pred_fallthru
    _
  %v39 = vld [vmem:[%s0] sm:$0xf]
  %v40 = vld [vmem:[%s0 + $0x4] sm:$0xf]
  %v41 = vld [vmem:[%s0 + $0x8] sm:$0xf]
  %v42 = vld [vmem:[%s0 + $0xc] sm:$0xf]
  %v43 = vld [vmem:[%s0 + $0x10] sm:$0xf]
  %v44 = vld [vmem:[%s0 + $0x14] sm:$0xf]
  %v45 = vld [vmem:[%s0 + $0x18] sm:$0xf]
  %v46 = vld [vmem:[%s0 + $0x1c] sm:$0xf]
  %v47 = vld [vmem:[%s0 + $0x20] sm:$0xf]
  %v48 = vld [vmem:[%s0 + $0x24] sm:$0xf]
  %v49 = vld [vmem:[%s0 + $0x28] sm:$0xf]
  %v50 = vld [vmem:[%s0 + $0x2c] sm:$0xf]
  %v51 = vld [vmem:[%s0 + $0x30] sm:$0xf]
  %v52 = vld [vmem:[%s0 + $0x34] sm:$0xf]
  %v53 = vld [vmem:[%s0 + $0x38] sm:$0xf]
  %v54 = vld [vmem:[%s0 + $0x3c] sm:$0xf]
  %v55 = vld [vmem:[%s0 + $0x40] sm:$0xf]
  %v56 = vld [vmem:[%s0 + $0x44] sm:$0xf]
  %v57 = vld [vmem:[%s0 + $0x48] sm:$0xf]
  %v58 = vld [vmem:[%s0 + $0x4c] sm:$0xf]
  %v59 = vld [vmem:[%s0 + $0x50] sm:$0xf]
  %v60 = vld [vmem:[%s0 + $0x54] sm:$0xf]
  %v61 = vld [vmem:[%s0 + $0x58] sm:$0xf]
  %v62 = vld [vmem:[%s0 + $0x5c] sm:$0xf]
  %v63 = vld [vmem:[%s0 + $0x60] sm:$0xf]
  %v64 = vld [vmem:[%s0 + $0x64] sm:$0xf]
  %v65 = vld [vmem:[%s0 + $0x68] sm:$0xf]
  %v66 = vld [vmem:[%s0 + $0x6c] sm:$0xf]
  %v67 = vld [vmem:[%s0 + $0x70] sm:$0xf]
  %v68 = vld [vmem:[%s0 + $0x74] sm:$0xf]
  %v69 = vld [vmem:[%s0 + $0x78] sm:$0xf]
  %v70 = vld [vmem:[%s0 + $0x7c] sm:$0xf]
  %v71 = vld [vmem:[%s2] sm:$0xf]
  %v72 = vld [vmem:[%s1] sm:$0xf]
  %v73 = vld [vmem:[%s1 + $0x4] sm:$0xf]
  %v74 = vld [vmem:[%s1 + $0x8] sm:$0xf]
  %v75 = vld [vmem:[%s1 + $0xc] sm:$0xf]
  %v76 = vld [vmem:[%s1 + $0x10] sm:$0xf]
  %v77 = vld [vmem:[%s1 + $0x14] sm:$0xf]
  %v78 = vld [vmem:[%s1 + $0x18] sm:$0xf]
  %v79 = vld [vmem:[%s1 + $0x1c] sm:$0xf]
  %v80 = vld [vmem:[%s1 + $0x20] sm:$0xf]
  %v81 = vld [vmem:[%s1 + $0x24] sm:$0xf]
  %v82 = vld [vmem:[%s1 + $0x28] sm:$0xf]
  %v83 = vld [vmem:[%s1 + $0x2c] sm:$0xf]
  %v84 = vld [vmem:[%s1 + $0x30] sm:$0xf]
  %v85 = vld [vmem:[%s1 + $0x34] sm:$0xf]
  %v86 = vld [vmem:[%s1 + $0x38] sm:$0xf]
  %v87 = vld [vmem:[%s1 + $0x3c] sm:$0xf]
  %v88 = vld [vmem:[%s1 + $0x40] sm:$0xf]
  %v89 = vld [vmem:[%s1 + $0x44] sm:$0xf]
  %v90 = vld [vmem:[%s1 + $0x48] sm:$0xf]
  %v91 = vld [vmem:[%s1 + $0x4c] sm:$0xf]
  %v92 = vld [vmem:[%s1 + $0x50] sm:$0xf]
  %v93 = vld [vmem:[%s1 + $0x54] sm:$0xf]
  %v94 = vld [vmem:[%s1 + $0x58] sm:$0xf]
  %v95 = vld [vmem:[%s1 + $0x5c] sm:$0xf]
  %v96 = vld [vmem:[%s1 + $0x60] sm:$0xf]
  %v97 = vld [vmem:[%s1 + $0x64] sm:$0xf]
  %v98 = vld [vmem:[%s1 + $0x68] sm:$0xf]
  %v99 = vld [vmem:[%s1 + $0x6c] sm:$0xf]
  %v100 = vld [vmem:[%s1 + $0x70] sm:$0xf]
  %v101 = vld [vmem:[%s1 + $0x74] sm:$0xf]
  %v102 = vld [vmem:[%s1 + $0x78] sm:$0xf]
  %v103 = vld [vmem:[%s1 + $0x7c] sm:$0xf]
  %v104 = vld [vmem:[%s3] sm:$0x3]
  %v137 = vunpack.c.l.b16 %v72
  %v138 = vunpack.c.l.b16 %v73
  %v139 = vunpack.c.l.b16 %v74
  %v140 = vunpack.c.l.b16 %v75
  %v141 = vunpack.c.l.b16 %v76
  %v142 = vunpack.c.l.b16 %v77
  %v143 = vunpack.c.l.b16 %v78
  %v144 = vunpack.c.l.b16 %v79
  %v145 = vunpack.c.l.b16 %v80
  %v146 = vunpack.c.l.b16 %v81
  %v147 = vunpack.c.l.b16 %v82
  %v148 = vunpack.c.l.b16 %v83
  %v149 = vunpack.c.l.b16 %v84
  %v150 = vunpack.c.l.b16 %v85
  %v151 = vunpack.c.l.b16 %v86
  %v152 = vunpack.c.l.b16 %v87
  %v153 = vunpack.c.l.b16 %v88
  %v154 = vunpack.c.l.b16 %v89
  %v155 = vunpack.c.l.b16 %v90
  %v156 = vunpack.c.l.b16 %v91
  %v157 = vunpack.c.l.b16 %v92
  %v158 = vunpack.c.l.b16 %v93
  %v159 = vunpack.c.l.b16 %v94
  %v160 = vunpack.c.l.b16 %v95
  %v161 = vunpack.c.l.b16 %v96
  %v162 = vunpack.c.l.b16 %v97
  %v163 = vunpack.c.l.b16 %v98
  %v164 = vunpack.c.l.b16 %v99
  %v165 = vunpack.c.l.b16 %v100
  %v166 = vunpack.c.l.b16 %v101
  %v167 = vunpack.c.l.b16 %v102
  %v168 = vunpack.c.l.b16 %v103
  %v169 = vpack.c.b16 %v138, %v137
  %v170 = vpack.c.b16 %v140, %v139
  %v171 = vpack.c.b16 %v142, %v141
  %v172 = vpack.c.b16 %v144, %v143
  %v173 = vpack.c.b16 %v146, %v145
  %v174 = vpack.c.b16 %v148, %v147
  %v175 = vpack.c.b16 %v150, %v149
  %v176 = vpack.c.b16 %v152, %v151
  %v177 = vpack.c.b16 %v154, %v153
  %v178 = vpack.c.b16 %v156, %v155
  %v179 = vpack.c.b16 %v158, %v157
  %v180 = vpack.c.b16 %v160, %v159
  %v181 = vpack.c.b16 %v162, %v161
  %v182 = vpack.c.b16 %v164, %v163
  %v183 = vpack.c.b16 %v166, %v165
  %v184 = vpack.c.b16 %v168, %v167
  %vm185 = vcmask 31744
  %v187 = vsel %vm185, %v169, 0
  %v190 = vsel %vm185, %v170, 0
  %v193 = vsel %vm185, %v171, 0
  %v196 = vsel %vm185, %v172, 0
  %v199 = vsel %vm185, %v173, 0
  %v202 = vsel %vm185, %v174, 0
  %v205 = vsel %vm185, %v175, 0
  %v208 = vsel %vm185, %v176, 0
  %v211 = vsel %vm185, %v177, 0
  %v214 = vsel %vm185, %v178, 0
  %v217 = vsel %vm185, %v179, 0
  %v220 = vsel %vm185, %v180, 0
  %v223 = vsel %vm185, %v181, 0
  %v226 = vsel %vm185, %v182, 0
  %v229 = vsel %vm185, %v183, 0
  %v232 = vsel %vm185, %v184, 0
  %vm234 = vcmask 1041408
  %v236 = vsel %vm234, %v104, 0
  %238 = vmatprep.subr.bf16.mxu0 0
  %239 = vmatpush1.bf16.msra.mxu0 0
  %240 = vmatprep.subr.bf16.mxu0 0
  %241 = vmatpush1.bf16.msra.mxu0 0
  %242 = vmatprep.subr.bf16.mxu0 0
  %243 = vmatpush1.bf16.msra.mxu0 0
  %244 = vmatprep.subr.bf16.mxu0 0
  %245 = vmatpush1.bf16.msra.mxu0 0
  %246 = vmatprep.subr.bf16.mxu0 0
  %247 = vmatpush1.bf16.msra.mxu0 0
  %248 = vmatprep.subr.bf16.mxu0 0
  %249 = vmatpush1.bf16.msra.mxu0 0
  %250 = vmatprep.subr.bf16.mxu0 0
  %251 = vmatpush1.bf16.msra.mxu0 0
  %252 = vmatprep.subr.bf16.mxu0 0
  %253 = vmatpush1.bf16.msra.mxu0 %v236
  %254 = vmatprep.subr.bf16.mxu0 0
  %255 = vmatpush2.bf16.msra.mxu0 0
  %256 = vmatprep.subr.bf16.mxu0 0
  %257 = vmatpush2.bf16.msra.mxu0 0
  %258 = vmatprep.subr.bf16.mxu0 0
  %259 = vmatpush2.bf16.msra.mxu0 0
  %260 = vmatprep.subr.bf16.mxu0 0
  %261 = vmatpush2.bf16.msra.mxu0 0
  %262 = vmatprep.subr.bf16.mxu0 0
  %263 = vmatpush2.bf16.msra.mxu0 0
  %264 = vmatprep.subr.bf16.mxu0 0
  %265 = vmatpush2.bf16.msra.mxu0 0
  %266 = vmatprep.subr.bf16.mxu0 0
  %267 = vmatpush2.bf16.msra.mxu0 0
  %268 = vmatprep.subr.bf16.mxu0 0
  %269 = vmatpush2.bf16.msra.mxu0 0
  %270 = vmatprep.mubr.bf16.mxu0 0
  %271 = vmatmul.mubr.bf16.gmra.mxu0 %v187
  %v272 = vpop.f32.mrf.mxu0
  %v273 = vadd.f32 0.0, %v272
  %v274 = vpop.f32.mrf.mxu0
  %v275 = vpop.f32.mrf.mxu0
  %v276 = vadd.f32 0.0, %v275
  %v277 = vpop.f32.mrf.mxu0
  %278 = vmatprep.mubr.bf16.mxu0 0
  %279 = vmatmul.mubr.bf16.gmra.mxu0 %v190
  %v280 = vpop.f32.mrf.mxu0
  %v281 = vadd.f32 0.0, %v280
  %v282 = vpop.f32.mrf.mxu0
  %v283 = vpop.f32.mrf.mxu0
  %v284 = vadd.f32 0.0, %v283
  %v285 = vpop.f32.mrf.mxu0
  %286 = vmatprep.mubr.bf16.mxu0 0
  %287 = vmatmul.mubr.bf16.gmra.mxu0 %v193
  %v288 = vpop.f32.mrf.mxu0
  %v289 = vadd.f32 0.0, %v288
  %v290 = vpop.f32.mrf.mxu0
  %v291 = vpop.f32.mrf.mxu0
  %v292 = vadd.f32 0.0, %v291
  %v293 = vpop.f32.mrf.mxu0
  %294 = vmatprep.mubr.bf16.mxu0 0
  %295 = vmatmul.mubr.bf16.gmra.mxu0 %v196
  %v296 = vpop.f32.mrf.mxu0
  %v297 = vadd.f32 0.0, %v296
  %v298 = vpop.f32.mrf.mxu0
  %v299 = vpop.f32.mrf.mxu0
  %v300 = vadd.f32 0.0, %v299
  %v301 = vpop.f32.mrf.mxu0
  %302 = vmatprep.mubr.bf16.mxu0 0
  %303 = vmatmul.mubr.bf16.gmra.mxu0 %v199
  %v304 = vpop.f32.mrf.mxu0
  %v305 = vadd.f32 0.0, %v304
  %v306 = vpop.f32.mrf.mxu0
  %v307 = vpop.f32.mrf.mxu0
  %v308 = vadd.f32 0.0, %v307
  %v309 = vpop.f32.mrf.mxu0
  %310 = vmatprep.mubr.bf16.mxu0 0
  %311 = vmatmul.mubr.bf16.gmra.mxu0 %v202
  %v312 = vpop.f32.mrf.mxu0
  %v313 = vadd.f32 0.0, %v312
  %v314 = vpop.f32.mrf.mxu0
  %v315 = vpop.f32.mrf.mxu0
  %v316 = vadd.f32 0.0, %v315
  %v317 = vpop.f32.mrf.mxu0
  %318 = vmatprep.mubr.bf16.mxu0 0
  %319 = vmatmul.mubr.bf16.gmra.mxu0 %v205
  %v320 = vpop.f32.mrf.mxu0
  %v321 = vadd.f32 0.0, %v320
  %v322 = vpop.f32.mrf.mxu0
  %v323 = vpop.f32.mrf.mxu0
  %v324 = vadd.f32 0.0, %v323
  %v325 = vpop.f32.mrf.mxu0
  %326 = vmatprep.mubr.bf16.mxu0 0
  %327 = vmatmul.mubr.bf16.gmra.mxu0 %v208
  %v328 = vpop.f32.mrf.mxu0
  %v329 = vadd.f32 0.0, %v328
  %v330 = vpop.f32.mrf.mxu0
  %v331 = vpop.f32.mrf.mxu0
  %v332 = vadd.f32 0.0, %v331
  %v333 = vpop.f32.mrf.mxu0
  %334 = vmatprep.mubr.bf16.mxu0 0
  %335 = vmatmul.mubr.bf16.gmra.mxu0 %v211
  %v336 = vpop.f32.mrf.mxu0
  %v337 = vadd.f32 0.0, %v336
  %v338 = vpop.f32.mrf.mxu0
  %v339 = vpop.f32.mrf.mxu0
  %v340 = vadd.f32 0.0, %v339
  %v341 = vpop.f32.mrf.mxu0
  %342 = vmatprep.mubr.bf16.mxu0 0
  %343 = vmatmul.mubr.bf16.gmra.mxu0 %v214
  %v344 = vpop.f32.mrf.mxu0
  %v345 = vadd.f32 0.0, %v344
  %v346 = vpop.f32.mrf.mxu0
  %v347 = vpop.f32.mrf.mxu0
  %v348 = vadd.f32 0.0, %v347
  %v349 = vpop.f32.mrf.mxu0
  %350 = vmatprep.mubr.bf16.mxu0 0
  %351 = vmatmul.mubr.bf16.gmra.mxu0 %v217
  %v352 = vpop.f32.mrf.mxu0
  %v353 = vadd.f32 0.0, %v352
  %v354 = vpop.f32.mrf.mxu0
  %v355 = vpop.f32.mrf.mxu0
  %v356 = vadd.f32 0.0, %v355
  %v357 = vpop.f32.mrf.mxu0
  %358 = vmatprep.mubr.bf16.mxu0 0
  %359 = vmatmul.mubr.bf16.gmra.mxu0 %v220
  %v360 = vpop.f32.mrf.mxu0
  %v361 = vadd.f32 0.0, %v360
  %v362 = vpop.f32.mrf.mxu0
  %v363 = vpop.f32.mrf.mxu0
  %v364 = vadd.f32 0.0, %v363
  %v365 = vpop.f32.mrf.mxu0
  %366 = vmatprep.mubr.bf16.mxu0 0
  %367 = vmatmul.mubr.bf16.gmra.mxu0 %v223
  %v368 = vpop.f32.mrf.mxu0
  %v369 = vadd.f32 0.0, %v368
  %v370 = vpop.f32.mrf.mxu0
  %v371 = vpop.f32.mrf.mxu0
  %v372 = vadd.f32 0.0, %v371
  %v373 = vpop.f32.mrf.mxu0
  %374 = vmatprep.mubr.bf16.mxu0 0
  %375 = vmatmul.mubr.bf16.gmra.mxu0 %v226
  %v376 = vpop.f32.mrf.mxu0
  %v377 = vadd.f32 0.0, %v376
  %v378 = vpop.f32.mrf.mxu0
  %v379 = vpop.f32.mrf.mxu0
  %v380 = vadd.f32 0.0, %v379
  %v381 = vpop.f32.mrf.mxu0
  %382 = vmatprep.mubr.bf16.mxu0 0
  %383 = vmatmul.mubr.bf16.gmra.mxu0 %v229
  %v384 = vpop.f32.mrf.mxu0
  %v385 = vadd.f32 0.0, %v384
  %v386 = vpop.f32.mrf.mxu0
  %v387 = vpop.f32.mrf.mxu0
  %v388 = vadd.f32 0.0, %v387
  %v389 = vpop.f32.mrf.mxu0
  %390 = vmatprep.mubr.bf16.mxu0 0
  %391 = vmatmul.mubr.bf16.gmra.mxu0 %v232
  %v392 = vpop.f32.mrf.mxu0
  %v393 = vadd.f32 0.0, %v392
  %v394 = vpop.f32.mrf.mxu0
  %v395 = vpop.f32.mrf.mxu0
  %v396 = vadd.f32 0.0, %v395
  %v397 = vpop.f32.mrf.mxu0
  %398 = vdwg.mxu0
  %v431 = vunpack.c.l.b16 %v39
  %v432 = vunpack.c.l.b16 %v40
  %v433 = vunpack.c.l.b16 %v41
  %v434 = vunpack.c.l.b16 %v42
  %v435 = vunpack.c.l.b16 %v43
  %v436 = vunpack.c.l.b16 %v44
  %v437 = vunpack.c.l.b16 %v45
  %v438 = vunpack.c.l.b16 %v46
  %v439 = vunpack.c.l.b16 %v47
  %v440 = vunpack.c.l.b16 %v48
  %v441 = vunpack.c.l.b16 %v49
  %v442 = vunpack.c.l.b16 %v50
  %v443 = vunpack.c.l.b16 %v51
  %v444 = vunpack.c.l.b16 %v52
  %v445 = vunpack.c.l.b16 %v53
  %v446 = vunpack.c.l.b16 %v54
  %v447 = vunpack.c.l.b16 %v55
  %v448 = vunpack.c.l.b16 %v56
  %v449 = vunpack.c.l.b16 %v57
  %v450 = vunpack.c.l.b16 %v58
  %v451 = vunpack.c.l.b16 %v59
  %v452 = vunpack.c.l.b16 %v60
  %v453 = vunpack.c.l.b16 %v61
  %v454 = vunpack.c.l.b16 %v62
  %v455 = vunpack.c.l.b16 %v63
  %v456 = vunpack.c.l.b16 %v64
  %v457 = vunpack.c.l.b16 %v65
  %v458 = vunpack.c.l.b16 %v66
  %v459 = vunpack.c.l.b16 %v67
  %v460 = vunpack.c.l.b16 %v68
  %v461 = vunpack.c.l.b16 %v69
  %v462 = vunpack.c.l.b16 %v70
  %v463 = vpack.c.b16 %v432, %v431
  %v464 = vpack.c.b16 %v434, %v433
  %v465 = vpack.c.b16 %v436, %v435
  %v466 = vpack.c.b16 %v438, %v437
  %v467 = vpack.c.b16 %v440, %v439
  %v468 = vpack.c.b16 %v442, %v441
  %v469 = vpack.c.b16 %v444, %v443
  %v470 = vpack.c.b16 %v446, %v445
  %v471 = vpack.c.b16 %v448, %v447
  %v472 = vpack.c.b16 %v450, %v449
  %v473 = vpack.c.b16 %v452, %v451
  %v474 = vpack.c.b16 %v454, %v453
  %v475 = vpack.c.b16 %v456, %v455
  %v476 = vpack.c.b16 %v458, %v457
  %v477 = vpack.c.b16 %v460, %v459
  %v478 = vpack.c.b16 %v462, %v461
  %vm479 = vcmask 64512
  %v481 = vsel %vm479, %v463, 0
  %v484 = vsel %vm479, %v464, 0
  %v487 = vsel %vm479, %v465, 0
  %v490 = vsel %vm479, %v466, 0
  %v493 = vsel %vm479, %v467, 0
  %v496 = vsel %vm479, %v468, 0
  %v499 = vsel %vm479, %v469, 0
  %v502 = vsel %vm479, %v470, 0
  %v505 = vsel %vm479, %v471, 0
  %v508 = vsel %vm479, %v472, 0
  %v511 = vsel %vm479, %v473, 0
  %v514 = vsel %vm479, %v474, 0
  %v517 = vsel %vm479, %v475, 0
  %v520 = vsel %vm479, %v476, 0
  %v523 = vsel %vm479, %v477, 0
  %v526 = vsel %vm479, %v478, 0
  %vm528 = vcmask 1043456
  %v530 = vsel %vm528, %v71, 0
  %532 = vmatprep.subr.bf16.mxu0 0
  %533 = vmatpush1.bf16.msra.mxu0 0
  %534 = vmatprep.subr.bf16.mxu0 0
  %535 = vmatpush1.bf16.msra.mxu0 0
  %536 = vmatprep.subr.bf16.mxu0 0
  %537 = vmatpush1.bf16.msra.mxu0 0
  %538 = vmatprep.subr.bf16.mxu0 0
  %539 = vmatpush1.bf16.msra.mxu0 0
  %540 = vmatprep.subr.bf16.mxu0 0
  %541 = vmatpush1.bf16.msra.mxu0 0
  %542 = vmatprep.subr.bf16.mxu0 0
  %543 = vmatpush1.bf16.msra.mxu0 0
  %544 = vmatprep.subr.bf16.mxu0 0
  %545 = vmatpush1.bf16.msra.mxu0 0
  %546 = vmatprep.subr.bf16.mxu0 0
  %547 = vmatpush1.bf16.msra.mxu0 %v530
  %548 = vmatprep.subr.bf16.mxu0 0
  %549 = vmatpush2.bf16.msra.mxu0 0
  %550 = vmatprep.subr.bf16.mxu0 0
  %551 = vmatpush2.bf16.msra.mxu0 0
  %552 = vmatprep.subr.bf16.mxu0 0
  %553 = vmatpush2.bf16.msra.mxu0 0
  %554 = vmatprep.subr.bf16.mxu0 0
  %555 = vmatpush2.bf16.msra.mxu0 0
  %556 = vmatprep.subr.bf16.mxu0 0
  %557 = vmatpush2.bf16.msra.mxu0 0
  %558 = vmatprep.subr.bf16.mxu0 0
  %559 = vmatpush2.bf16.msra.mxu0 0
  %560 = vmatprep.subr.bf16.mxu0 0
  %561 = vmatpush2.bf16.msra.mxu0 0
  %562 = vmatprep.subr.bf16.mxu0 0
  %563 = vmatpush2.bf16.msra.mxu0 0
  %564 = vmatprep.mubr.bf16.mxu0 0
  %565 = vmatmul.mubr.bf16.gmra.mxu0 %v481
  %v566 = vpop.f32.mrf.mxu0
  %v567 = vadd.f32 %v273, %v566
  %v568 = vpop.f32.mrf.mxu0
  %v569 = vpop.f32.mrf.mxu0
  %v570 = vadd.f32 %v276, %v569
  %v571 = vpop.f32.mrf.mxu0
  %572 = vmatprep.mubr.bf16.mxu0 0
  %573 = vmatmul.mubr.bf16.gmra.mxu0 %v484
  %v574 = vpop.f32.mrf.mxu0
  %v575 = vadd.f32 %v281, %v574
  %v576 = vpop.f32.mrf.mxu0
  %v577 = vpop.f32.mrf.mxu0
  %v578 = vadd.f32 %v284, %v577
  %v579 = vpop.f32.mrf.mxu0
  %580 = vmatprep.mubr.bf16.mxu0 0
  %581 = vmatmul.mubr.bf16.gmra.mxu0 %v487
  %v582 = vpop.f32.mrf.mxu0
  %v583 = vadd.f32 %v289, %v582
  %v584 = vpop.f32.mrf.mxu0
  %v585 = vpop.f32.mrf.mxu0
  %v586 = vadd.f32 %v292, %v585
  %v587 = vpop.f32.mrf.mxu0
  %588 = vmatprep.mubr.bf16.mxu0 0
  %589 = vmatmul.mubr.bf16.gmra.mxu0 %v490
  %v590 = vpop.f32.mrf.mxu0
  %v591 = vadd.f32 %v297, %v590
  %v592 = vpop.f32.mrf.mxu0
  %v593 = vpop.f32.mrf.mxu0
  %v594 = vadd.f32 %v300, %v593
  %v595 = vpop.f32.mrf.mxu0
  %596 = vmatprep.mubr.bf16.mxu0 0
  %597 = vmatmul.mubr.bf16.gmra.mxu0 %v493
  %v598 = vpop.f32.mrf.mxu0
  %v599 = vadd.f32 %v305, %v598
  %v600 = vpop.f32.mrf.mxu0
  %v601 = vpop.f32.mrf.mxu0
  %v602 = vadd.f32 %v308, %v601
  %v603 = vpop.f32.mrf.mxu0
  %604 = vmatprep.mubr.bf16.mxu0 0
  %605 = vmatmul.mubr.bf16.gmra.mxu0 %v496
  %v606 = vpop.f32.mrf.mxu0
  %v607 = vadd.f32 %v313, %v606
  %v608 = vpop.f32.mrf.mxu0
  %v609 = vpop.f32.mrf.mxu0
  %v610 = vadd.f32 %v316, %v609
  %v611 = vpop.f32.mrf.mxu0
  %612 = vmatprep.mubr.bf16.mxu0 0
  %613 = vmatmul.mubr.bf16.gmra.mxu0 %v499
  %v614 = vpop.f32.mrf.mxu0
  %v615 = vadd.f32 %v321, %v614
  %v616 = vpop.f32.mrf.mxu0
  %v617 = vpop.f32.mrf.mxu0
  %v618 = vadd.f32 %v324, %v617
  %v619 = vpop.f32.mrf.mxu0
  %620 = vmatprep.mubr.bf16.mxu0 0
  %621 = vmatmul.mubr.bf16.gmra.mxu0 %v502
  %v622 = vpop.f32.mrf.mxu0
  %v623 = vadd.f32 %v329, %v622
  %v624 = vpop.f32.mrf.mxu0
  %v625 = vpop.f32.mrf.mxu0
  %v626 = vadd.f32 %v332, %v625
  %v627 = vpop.f32.mrf.mxu0
  %628 = vmatprep.mubr.bf16.mxu0 0
  %629 = vmatmul.mubr.bf16.gmra.mxu0 %v505
  %v630 = vpop.f32.mrf.mxu0
  %v631 = vadd.f32 %v337, %v630
  %v632 = vpop.f32.mrf.mxu0
  %v633 = vpop.f32.mrf.mxu0
  %v634 = vadd.f32 %v340, %v633
  %v635 = vpop.f32.mrf.mxu0
  %636 = vmatprep.mubr.bf16.mxu0 0
  %637 = vmatmul.mubr.bf16.gmra.mxu0 %v508
  %v638 = vpop.f32.mrf.mxu0
  %v639 = vadd.f32 %v345, %v638
  %v640 = vpop.f32.mrf.mxu0
  %v641 = vpop.f32.mrf.mxu0
  %v642 = vadd.f32 %v348, %v641
  %v643 = vpop.f32.mrf.mxu0
  %644 = vmatprep.mubr.bf16.mxu0 0
  %645 = vmatmul.mubr.bf16.gmra.mxu0 %v511
  %v646 = vpop.f32.mrf.mxu0
  %v647 = vadd.f32 %v353, %v646
  %v648 = vpop.f32.mrf.mxu0
  %v649 = vpop.f32.mrf.mxu0
  %v650 = vadd.f32 %v356, %v649
  %v651 = vpop.f32.mrf.mxu0
  %652 = vmatprep.mubr.bf16.mxu0 0
  %653 = vmatmul.mubr.bf16.gmra.mxu0 %v514
  %v654 = vpop.f32.mrf.mxu0
  %v655 = vadd.f32 %v361, %v654
  %v656 = vpop.f32.mrf.mxu0
  %v657 = vpop.f32.mrf.mxu0
  %v658 = vadd.f32 %v364, %v657
  %v659 = vpop.f32.mrf.mxu0
  %660 = vmatprep.mubr.bf16.mxu0 0
  %661 = vmatmul.mubr.bf16.gmra.mxu0 %v517
  %v662 = vpop.f32.mrf.mxu0
  %v663 = vadd.f32 %v369, %v662
  %v664 = vpop.f32.mrf.mxu0
  %v665 = vpop.f32.mrf.mxu0
  %v666 = vadd.f32 %v372, %v665
  %v667 = vpop.f32.mrf.mxu0
  %668 = vmatprep.mubr.bf16.mxu0 0
  %669 = vmatmul.mubr.bf16.gmra.mxu0 %v520
  %v670 = vpop.f32.mrf.mxu0
  %v671 = vadd.f32 %v377, %v670
  %v672 = vpop.f32.mrf.mxu0
  %v673 = vpop.f32.mrf.mxu0
  %v674 = vadd.f32 %v380, %v673
  %v675 = vpop.f32.mrf.mxu0
  %676 = vmatprep.mubr.bf16.mxu0 0
  %677 = vmatmul.mubr.bf16.gmra.mxu0 %v523
  %v678 = vpop.f32.mrf.mxu0
  %v679 = vadd.f32 %v385, %v678
  %v680 = vpop.f32.mrf.mxu0
  %v681 = vpop.f32.mrf.mxu0
  %v682 = vadd.f32 %v388, %v681
  %v683 = vpop.f32.mrf.mxu0
  %684 = vmatprep.mubr.bf16.mxu0 0
  %685 = vmatmul.mubr.bf16.gmra.mxu0 %v526
  %v686 = vpop.f32.mrf.mxu0
  %v687 = vadd.f32 %v393, %v686
  %v688 = vpop.f32.mrf.mxu0
  %v689 = vpop.f32.mrf.mxu0
  %v690 = vadd.f32 %v396, %v689
  %v691 = vpop.f32.mrf.mxu0
  %692 = vdwg.mxu0
  %v693 = vld [vmem:[%s4] sm:$0x1]
  %v695 = vlaneseq
  %v696 = vshrl.u32 %v695, 7
  %v697 = vsub.s32 0, %v696
  %v698 = vrot.slane %v693, %v697
  %v700 = vadd.f32 %v567, %v698
  %v701 = vadd.f32 %v570, %v698
  %v702 = vadd.f32 %v575, %v698
  %v703 = vadd.f32 %v578, %v698
  %v704 = vadd.f32 %v583, %v698
  %v705 = vadd.f32 %v586, %v698
  %v706 = vadd.f32 %v591, %v698
  %v707 = vadd.f32 %v594, %v698
  %v708 = vadd.f32 %v599, %v698
  %v709 = vadd.f32 %v602, %v698
  %v710 = vadd.f32 %v607, %v698
  %v711 = vadd.f32 %v610, %v698
  %v712 = vadd.f32 %v615, %v698
  %v713 = vadd.f32 %v618, %v698
  %v714 = vadd.f32 %v623, %v698
  %v715 = vadd.f32 %v626, %v698
  %v716 = vadd.f32 %v631, %v698
  %v717 = vadd.f32 %v634, %v698
  %v718 = vadd.f32 %v639, %v698
  %v719 = vadd.f32 %v642, %v698
  %v720 = vadd.f32 %v647, %v698
  %v721 = vadd.f32 %v650, %v698
  %v722 = vadd.f32 %v655, %v698
  %v723 = vadd.f32 %v658, %v698
  %v724 = vadd.f32 %v663, %v698
  %v725 = vadd.f32 %v666, %v698
  %v726 = vadd.f32 %v671, %v698
  %v727 = vadd.f32 %v674, %v698
  %v728 = vadd.f32 %v679, %v698
  %v729 = vadd.f32 %v682, %v698
  %v730 = vadd.f32 %v687, %v698
  %v731 = vadd.f32 %v690, %v698
  %v732 = vmax.f32 %v700, 0.0
  %v733 = vmax.f32 %v701, 0.0
  %v734 = vmax.f32 %v702, 0.0
  %v735 = vmax.f32 %v703, 0.0
  %v736 = vmax.f32 %v704, 0.0
  %v737 = vmax.f32 %v705, 0.0
  %v738 = vmax.f32 %v706, 0.0
  %v739 = vmax.f32 %v707, 0.0
  %v740 = vmax.f32 %v708, 0.0
  %v741 = vmax.f32 %v709, 0.0
  %v742 = vmax.f32 %v710, 0.0
  %v743 = vmax.f32 %v711, 0.0
  %v744 = vmax.f32 %v712, 0.0
  %v745 = vmax.f32 %v713, 0.0
  %v746 = vmax.f32 %v714, 0.0
  %v747 = vmax.f32 %v715, 0.0
  %v748 = vmax.f32 %v716, 0.0
  %v749 = vmax.f32 %v717, 0.0
  %v750 = vmax.f32 %v718, 0.0
  %v751 = vmax.f32 %v719, 0.0
  %v752 = vmax.f32 %v720, 0.0
  %v753 = vmax.f32 %v721, 0.0
  %v754 = vmax.f32 %v722, 0.0
  %v755 = vmax.f32 %v723, 0.0
  %v756 = vmax.f32 %v724, 0.0
  %v757 = vmax.f32 %v725, 0.0
  %v758 = vmax.f32 %v726, 0.0
  %v759 = vmax.f32 %v727, 0.0
  %v760 = vmax.f32 %v728, 0.0
  %v761 = vmax.f32 %v729, 0.0
  %v762 = vmax.f32 %v730, 0.0
  %v763 = vmax.f32 %v731, 0.0
  %v764 = vpack.c.bf16 %v733, %v732
  %v765 = vpack.c.bf16 %v735, %v734
  %v766 = vpack.c.bf16 %v737, %v736
  %v767 = vpack.c.bf16 %v739, %v738
  %v768 = vpack.c.bf16 %v741, %v740
  %v769 = vpack.c.bf16 %v743, %v742
  %v770 = vpack.c.bf16 %v745, %v744
  %v771 = vpack.c.bf16 %v747, %v746
  %v772 = vpack.c.bf16 %v749, %v748
  %v773 = vpack.c.bf16 %v751, %v750
  %v774 = vpack.c.bf16 %v753, %v752
  %v775 = vpack.c.bf16 %v755, %v754
  %v776 = vpack.c.bf16 %v757, %v756
  %v777 = vpack.c.bf16 %v759, %v758
  %v778 = vpack.c.bf16 %v761, %v760
  %v779 = vpack.c.bf16 %v763, %v762
  %v780 = vld [vmem:[%s5] sm:$0xf]
  %v781 = vld [vmem:[%s5 + $0x4] sm:$0xf]
  %v782 = vld [vmem:[%s5 + $0x8] sm:$0xf]
  %v783 = vld [vmem:[%s5 + $0xc] sm:$0xf]
  %v784 = vld [vmem:[%s6] sm:$0x1]
  %v786 = vlaneseq
  %v787 = vshrl.u32 %v786, 7
  %v788 = vsub.s32 0, %v787
  %v789 = vrot.slane %v784, %v788
  %v795 = vunpack.c.l.b16 %v780
  %v796 = vunpack.c.l.b16 %v781
  %v797 = vunpack.c.l.b16 %v782
  %v798 = vunpack.c.l.b16 %v783
  %v799 = vpack.c.b16 %v796, %v795
  %v800 = vpack.c.b16 %v798, %v797
  %vm803 = vcmask 261120
  %v805 = vsel %vm803, %v764, 0
  %v808 = vsel %vm803, %v765, 0
  %v811 = vsel %vm803, %v766, 0
  %v814 = vsel %vm803, %v767, 0
  %v817 = vsel %vm803, %v768, 0
  %v820 = vsel %vm803, %v769, 0
  %v823 = vsel %vm803, %v770, 0
  %v826 = vsel %vm803, %v771, 0
  %v829 = vsel %vm803, %v772, 0
  %v832 = vsel %vm803, %v773, 0
  %v835 = vsel %vm803, %v774, 0
  %v838 = vsel %vm803, %v775, 0
  %v841 = vsel %vm803, %v776, 0
  %v844 = vsel %vm803, %v777, 0
  %v847 = vsel %vm803, %v778, 0
  %v850 = vsel %vm803, %v779, 0
  %852 = vmatprep.subr.bf16.mxu0 0
  %853 = vmatpush1.bf16.msra.mxu0 0
  %854 = vmatprep.subr.bf16.mxu0 0
  %855 = vmatpush1.bf16.msra.mxu0 0
  %856 = vmatprep.subr.bf16.mxu0 0
  %857 = vmatpush1.bf16.msra.mxu0 0
  %858 = vmatprep.subr.bf16.mxu0 0
  %859 = vmatpush1.bf16.msra.mxu0 0
  %860 = vmatprep.subr.bf16.mxu0 0
  %861 = vmatpush1.bf16.msra.mxu0 0
  %862 = vmatprep.subr.bf16.mxu0 0
  %863 = vmatpush1.bf16.msra.mxu0 0
  %864 = vmatprep.subr.bf16.mxu0 0
  %865 = vmatpush1.bf16.msra.mxu0 %v800
  %866 = vmatprep.subr.bf16.mxu0 0
  %867 = vmatpush1.bf16.msra.mxu0 %v799
  %868 = vmatprep.subr.bf16.mxu0 0
  %869 = vmatpush2.bf16.msra.mxu0 0
  %870 = vmatprep.subr.bf16.mxu0 0
  %871 = vmatpush2.bf16.msra.mxu0 0
  %872 = vmatprep.subr.bf16.mxu0 0
  %873 = vmatpush2.bf16.msra.mxu0 0
  %874 = vmatprep.subr.bf16.mxu0 0
  %875 = vmatpush2.bf16.msra.mxu0 0
  %876 = vmatprep.subr.bf16.mxu0 0
  %877 = vmatpush2.bf16.msra.mxu0 0
  %878 = vmatprep.subr.bf16.mxu0 0
  %879 = vmatpush2.bf16.msra.mxu0 0
  %880 = vmatprep.subr.bf16.mxu0 0
  %881 = vmatpush2.bf16.msra.mxu0 0
  %882 = vmatprep.subr.bf16.mxu0 0
  %883 = vmatpush2.bf16.msra.mxu0 0
  %884 = vmatprep.mubr.bf16.mxu0 0
  %885 = vmatmul.mubr.bf16.gmra.mxu0 %v805
  %v886 = vpop.f32.mrf.mxu0
  %v887 = vadd.f32 %v789, %v886
  %v888 = vpop.f32.mrf.mxu0
  %v889 = vpop.f32.mrf.mxu0
  %v890 = vadd.f32 %v789, %v889
  %v891 = vpop.f32.mrf.mxu0
  %892 = vmatprep.mubr.bf16.mxu0 0
  %893 = vmatmul.mubr.bf16.gmra.mxu0 %v808
  %v894 = vpop.f32.mrf.mxu0
  %v895 = vadd.f32 %v789, %v894
  %v896 = vpop.f32.mrf.mxu0
  %v897 = vpop.f32.mrf.mxu0
  %v898 = vadd.f32 %v789, %v897
  %v899 = vpop.f32.mrf.mxu0
  %900 = vmatprep.mubr.bf16.mxu0 0
  %901 = vmatmul.mubr.bf16.gmra.mxu0 %v811
  %v902 = vpop.f32.mrf.mxu0
  %v903 = vadd.f32 %v789, %v902
  %v904 = vpop.f32.mrf.mxu0
  %v905 = vpop.f32.mrf.mxu0
  %v906 = vadd.f32 %v789, %v905
  %v907 = vpop.f32.mrf.mxu0
  %908 = vmatprep.mubr.bf16.mxu0 0
  %909 = vmatmul.mubr.bf16.gmra.mxu0 %v814
  %v910 = vpop.f32.mrf.mxu0
  %v911 = vadd.f32 %v789, %v910
  %v912 = vpop.f32.mrf.mxu0
  %v913 = vpop.f32.mrf.mxu0
  %v914 = vadd.f32 %v789, %v913
  %v915 = vpop.f32.mrf.mxu0
  %916 = vmatprep.mubr.bf16.mxu0 0
  %917 = vmatmul.mubr.bf16.gmra.mxu0 %v817
  %v918 = vpop.f32.mrf.mxu0
  %v919 = vadd.f32 %v789, %v918
  %v920 = vpop.f32.mrf.mxu0
  %v921 = vpop.f32.mrf.mxu0
  %v922 = vadd.f32 %v789, %v921
  %v923 = vpop.f32.mrf.mxu0
  %924 = vmatprep.mubr.bf16.mxu0 0
  %925 = vmatmul.mubr.bf16.gmra.mxu0 %v820
  %v926 = vpop.f32.mrf.mxu0
  %v927 = vadd.f32 %v789, %v926
  %v928 = vpop.f32.mrf.mxu0
  %v929 = vpop.f32.mrf.mxu0
  %v930 = vadd.f32 %v789, %v929
  %v931 = vpop.f32.mrf.mxu0
  %932 = vmatprep.mubr.bf16.mxu0 0
  %933 = vmatmul.mubr.bf16.gmra.mxu0 %v823
  %v934 = vpop.f32.mrf.mxu0
  %v935 = vadd.f32 %v789, %v934
  %v936 = vpop.f32.mrf.mxu0
  %v937 = vpop.f32.mrf.mxu0
  %v938 = vadd.f32 %v789, %v937
  %v939 = vpop.f32.mrf.mxu0
  %940 = vmatprep.mubr.bf16.mxu0 0
  %941 = vmatmul.mubr.bf16.gmra.mxu0 %v826
  %v942 = vpop.f32.mrf.mxu0
  %v943 = vadd.f32 %v789, %v942
  %v944 = vpop.f32.mrf.mxu0
  %v945 = vpop.f32.mrf.mxu0
  %v946 = vadd.f32 %v789, %v945
  %v947 = vpop.f32.mrf.mxu0
  %948 = vmatprep.mubr.bf16.mxu0 0
  %949 = vmatmul.mubr.bf16.gmra.mxu0 %v829
  %v950 = vpop.f32.mrf.mxu0
  %v951 = vadd.f32 %v789, %v950
  %v952 = vpop.f32.mrf.mxu0
  %v953 = vpop.f32.mrf.mxu0
  %v954 = vadd.f32 %v789, %v953
  %v955 = vpop.f32.mrf.mxu0
  %956 = vmatprep.mubr.bf16.mxu0 0
  %957 = vmatmul.mubr.bf16.gmra.mxu0 %v832
  %v958 = vpop.f32.mrf.mxu0
  %v959 = vadd.f32 %v789, %v958
  %v960 = vpop.f32.mrf.mxu0
  %v961 = vpop.f32.mrf.mxu0
  %v962 = vadd.f32 %v789, %v961
  %v963 = vpop.f32.mrf.mxu0
  %964 = vmatprep.mubr.bf16.mxu0 0
  %965 = vmatmul.mubr.bf16.gmra.mxu0 %v835
  %v966 = vpop.f32.mrf.mxu0
  %v967 = vadd.f32 %v789, %v966
  %v968 = vpop.f32.mrf.mxu0
  %v969 = vpop.f32.mrf.mxu0
  %v970 = vadd.f32 %v789, %v969
  %v971 = vpop.f32.mrf.mxu0
  %972 = vmatprep.mubr.bf16.mxu0 0
  %973 = vmatmul.mubr.bf16.gmra.mxu0 %v838
  %v974 = vpop.f32.mrf.mxu0
  %v975 = vadd.f32 %v789, %v974
  %v976 = vpop.f32.mrf.mxu0
  %v977 = vpop.f32.mrf.mxu0
  %v978 = vadd.f32 %v789, %v977
  %v979 = vpop.f32.mrf.mxu0
  %980 = vmatprep.mubr.bf16.mxu0 0
  %981 = vmatmul.mubr.bf16.gmra.mxu0 %v841
  %v982 = vpop.f32.mrf.mxu0
  %v983 = vadd.f32 %v789, %v982
  %v984 = vpop.f32.mrf.mxu0
  %v985 = vpop.f32.mrf.mxu0
  %v986 = vadd.f32 %v789, %v985
  %v987 = vpop.f32.mrf.mxu0
  %988 = vmatprep.mubr.bf16.mxu0 0
  %989 = vmatmul.mubr.bf16.gmra.mxu0 %v844
  %v990 = vpop.f32.mrf.mxu0
  %v991 = vadd.f32 %v789, %v990
  %v992 = vpop.f32.mrf.mxu0
  %v993 = vpop.f32.mrf.mxu0
  %v994 = vadd.f32 %v789, %v993
  %v995 = vpop.f32.mrf.mxu0
  %996 = vmatprep.mubr.bf16.mxu0 0
  %997 = vmatmul.mubr.bf16.gmra.mxu0 %v847
  %v998 = vpop.f32.mrf.mxu0
  %v999 = vadd.f32 %v789, %v998
  %v1000 = vpop.f32.mrf.mxu0
  %v1001 = vpop.f32.mrf.mxu0
  %v1002 = vadd.f32 %v789, %v1001
  %v1003 = vpop.f32.mrf.mxu0
  %1004 = vmatprep.mubr.bf16.mxu0 0
  %1005 = vmatmul.mubr.bf16.gmra.mxu0 %v850
  %v1006 = vpop.f32.mrf.mxu0
  %v1007 = vadd.f32 %v789, %v1006
  %v1008 = vpop.f32.mrf.mxu0
  %v1009 = vpop.f32.mrf.mxu0
  %v1010 = vadd.f32 %v789, %v1009
  %v1011 = vpop.f32.mrf.mxu0
  %1012 = vdwg.mxu0
  %v1013 = vmax.f32 %v887, 0.0
  %v1014 = vmax.f32 %v890, 0.0
  %v1015 = vmax.f32 %v895, 0.0
  %v1016 = vmax.f32 %v898, 0.0
  %v1017 = vmax.f32 %v903, 0.0
  %v1018 = vmax.f32 %v906, 0.0
  %v1019 = vmax.f32 %v911, 0.0
  %v1020 = vmax.f32 %v914, 0.0
  %v1021 = vmax.f32 %v919, 0.0
  %v1022 = vmax.f32 %v922, 0.0
  %v1023 = vmax.f32 %v927, 0.0
  %v1024 = vmax.f32 %v930, 0.0
  %v1025 = vmax.f32 %v935, 0.0
  %v1026 = vmax.f32 %v938, 0.0
  %v1027 = vmax.f32 %v943, 0.0
  %v1028 = vmax.f32 %v946, 0.0
  %v1029 = vmax.f32 %v951, 0.0
  %v1030 = vmax.f32 %v954, 0.0
  %v1031 = vmax.f32 %v959, 0.0
  %v1032 = vmax.f32 %v962, 0.0
  %v1033 = vmax.f32 %v967, 0.0
  %v1034 = vmax.f32 %v970, 0.0
  %v1035 = vmax.f32 %v975, 0.0
  %v1036 = vmax.f32 %v978, 0.0
  %v1037 = vmax.f32 %v983, 0.0
  %v1038 = vmax.f32 %v986, 0.0
  %v1039 = vmax.f32 %v991, 0.0
  %v1040 = vmax.f32 %v994, 0.0
  %v1041 = vmax.f32 %v999, 0.0
  %v1042 = vmax.f32 %v1002, 0.0
  %v1043 = vmax.f32 %v1007, 0.0
  %v1044 = vmax.f32 %v1010, 0.0
  %v1045 = vpack.c.bf16 %v1014, %v1013
  %v1046 = vpack.c.bf16 %v1016, %v1015
  %v1047 = vpack.c.bf16 %v1018, %v1017
  %v1048 = vpack.c.bf16 %v1020, %v1019
  %v1049 = vpack.c.bf16 %v1022, %v1021
  %v1050 = vpack.c.bf16 %v1024, %v1023
  %v1051 = vpack.c.bf16 %v1026, %v1025
  %v1052 = vpack.c.bf16 %v1028, %v1027
  %v1053 = vpack.c.bf16 %v1030, %v1029
  %v1054 = vpack.c.bf16 %v1032, %v1031
  %v1055 = vpack.c.bf16 %v1034, %v1033
  %v1056 = vpack.c.bf16 %v1036, %v1035
  %v1057 = vpack.c.bf16 %v1038, %v1037
  %v1058 = vpack.c.bf16 %v1040, %v1039
  %v1059 = vpack.c.bf16 %v1042, %v1041
  %v1060 = vpack.c.bf16 %v1044, %v1043
  %v1061 = vld [vmem:[%s7] sm:$0xf]
  %v1062 = vld [vmem:[%s7 + $0x4] sm:$0xf]
  %v1063 = vld [vmem:[%s7 + $0x8] sm:$0xf]
  %v1064 = vld [vmem:[%s7 + $0xc] sm:$0xf]
  %v1065 = vld [vmem:[%s8] sm:$0x1]
  %v1067 = vlaneseq
  %v1068 = vshrl.u32 %v1067, 7
  %v1069 = vsub.s32 0, %v1068
  %v1070 = vrot.slane %v1065, %v1069
  %v1076 = vunpack.c.l.b16 %v1061
  %v1077 = vunpack.c.l.b16 %v1062
  %v1078 = vunpack.c.l.b16 %v1063
  %v1079 = vunpack.c.l.b16 %v1064
  %v1080 = vpack.c.b16 %v1077, %v1076
  %v1081 = vpack.c.b16 %v1079, %v1078
  %v1085 = vsel %vm803, %v1045, 0
  %v1088 = vsel %vm803, %v1046, 0
  %v1091 = vsel %vm803, %v1047, 0
  %v1094 = vsel %vm803, %v1048, 0
  %v1097 = vsel %vm803, %v1049, 0
  %v1100 = vsel %vm803, %v1050, 0
  %v1103 = vsel %vm803, %v1051, 0
  %v1106 = vsel %vm803, %v1052, 0
  %v1109 = vsel %vm803, %v1053, 0
  %v1112 = vsel %vm803, %v1054, 0
  %v1115 = vsel %vm803, %v1055, 0
  %v1118 = vsel %vm803, %v1056, 0
  %v1121 = vsel %vm803, %v1057, 0
  %v1124 = vsel %vm803, %v1058, 0
  %v1127 = vsel %vm803, %v1059, 0
  %v1130 = vsel %vm803, %v1060, 0
  %1132 = vmatprep.subr.bf16.mxu0 0
  %1133 = vmatpush1.bf16.msra.mxu0 0
  %1134 = vmatprep.subr.bf16.mxu0 0
  %1135 = vmatpush1.bf16.msra.mxu0 0
  %1136 = vmatprep.subr.bf16.mxu0 0
  %1137 = vmatpush1.bf16.msra.mxu0 0
  %1138 = vmatprep.subr.bf16.mxu0 0
  %1139 = vmatpush1.bf16.msra.mxu0 0
  %1140 = vmatprep.subr.bf16.mxu0 0
  %1141 = vmatpush1.bf16.msra.mxu0 0
  %1142 = vmatprep.subr.bf16.mxu0 0
  %1143 = vmatpush1.bf16.msra.mxu0 0
  %1144 = vmatprep.subr.bf16.mxu0 0
  %1145 = vmatpush1.bf16.msra.mxu0 %v1081
  %1146 = vmatprep.subr.bf16.mxu0 0
  %1147 = vmatpush1.bf16.msra.mxu0 %v1080
  %1148 = vmatprep.subr.bf16.mxu0 0
  %1149 = vmatpush2.bf16.msra.mxu0 0
  %1150 = vmatprep.subr.bf16.mxu0 0
  %1151 = vmatpush2.bf16.msra.mxu0 0
  %1152 = vmatprep.subr.bf16.mxu0 0
  %1153 = vmatpush2.bf16.msra.mxu0 0
  %1154 = vmatprep.subr.bf16.mxu0 0
  %1155 = vmatpush2.bf16.msra.mxu0 0
  %1156 = vmatprep.subr.bf16.mxu0 0
  %1157 = vmatpush2.bf16.msra.mxu0 0
  %1158 = vmatprep.subr.bf16.mxu0 0
  %1159 = vmatpush2.bf16.msra.mxu0 0
  %1160 = vmatprep.subr.bf16.mxu0 0
  %1161 = vmatpush2.bf16.msra.mxu0 0
  %1162 = vmatprep.subr.bf16.mxu0 0
  %1163 = vmatpush2.bf16.msra.mxu0 0
  %1164 = vmatprep.mubr.bf16.mxu0 0
  %1165 = vmatmul.mubr.bf16.gmra.mxu0 %v1085
  %v1166 = vpop.f32.mrf.mxu0
  %v1167 = vadd.f32 %v1070, %v1166
  %v1168 = vpop.f32.mrf.mxu0
  %v1169 = vpop.f32.mrf.mxu0
  %v1170 = vadd.f32 %v1070, %v1169
  %v1171 = vpop.f32.mrf.mxu0
  %1172 = vmatprep.mubr.bf16.mxu0 0
  %1173 = vmatmul.mubr.bf16.gmra.mxu0 %v1088
  %v1174 = vpop.f32.mrf.mxu0
  %v1175 = vadd.f32 %v1070, %v1174
  %v1176 = vpop.f32.mrf.mxu0
  %v1177 = vpop.f32.mrf.mxu0
  %v1178 = vadd.f32 %v1070, %v1177
  %v1179 = vpop.f32.mrf.mxu0
  %1180 = vmatprep.mubr.bf16.mxu0 0
  %1181 = vmatmul.mubr.bf16.gmra.mxu0 %v1091
  %v1182 = vpop.f32.mrf.mxu0
  %v1183 = vadd.f32 %v1070, %v1182
  %v1184 = vpop.f32.mrf.mxu0
  %v1185 = vpop.f32.mrf.mxu0
  %v1186 = vadd.f32 %v1070, %v1185
  %v1187 = vpop.f32.mrf.mxu0
  %1188 = vmatprep.mubr.bf16.mxu0 0
  %1189 = vmatmul.mubr.bf16.gmra.mxu0 %v1094
  %v1190 = vpop.f32.mrf.mxu0
  %v1191 = vadd.f32 %v1070, %v1190
  %v1192 = vpop.f32.mrf.mxu0
  %v1193 = vpop.f32.mrf.mxu0
  %v1194 = vadd.f32 %v1070, %v1193
  %v1195 = vpop.f32.mrf.mxu0
  %1196 = vmatprep.mubr.bf16.mxu0 0
  %1197 = vmatmul.mubr.bf16.gmra.mxu0 %v1097
  %v1198 = vpop.f32.mrf.mxu0
  %v1199 = vadd.f32 %v1070, %v1198
  %v1200 = vpop.f32.mrf.mxu0
  %v1201 = vpop.f32.mrf.mxu0
  %v1202 = vadd.f32 %v1070, %v1201
  %v1203 = vpop.f32.mrf.mxu0
  %1204 = vmatprep.mubr.bf16.mxu0 0
  %1205 = vmatmul.mubr.bf16.gmra.mxu0 %v1100
  %v1206 = vpop.f32.mrf.mxu0
  %v1207 = vadd.f32 %v1070, %v1206
  %v1208 = vpop.f32.mrf.mxu0
  %v1209 = vpop.f32.mrf.mxu0
  %v1210 = vadd.f32 %v1070, %v1209
  %v1211 = vpop.f32.mrf.mxu0
  %1212 = vmatprep.mubr.bf16.mxu0 0
  %1213 = vmatmul.mubr.bf16.gmra.mxu0 %v1103
  %v1214 = vpop.f32.mrf.mxu0
  %v1215 = vadd.f32 %v1070, %v1214
  %v1216 = vpop.f32.mrf.mxu0
  %v1217 = vpop.f32.mrf.mxu0
  %v1218 = vadd.f32 %v1070, %v1217
  %v1219 = vpop.f32.mrf.mxu0
  %1220 = vmatprep.mubr.bf16.mxu0 0
  %1221 = vmatmul.mubr.bf16.gmra.mxu0 %v1106
  %v1222 = vpop.f32.mrf.mxu0
  %v1223 = vadd.f32 %v1070, %v1222
  %v1224 = vpop.f32.mrf.mxu0
  %v1225 = vpop.f32.mrf.mxu0
  %v1226 = vadd.f32 %v1070, %v1225
  %v1227 = vpop.f32.mrf.mxu0
  %1228 = vmatprep.mubr.bf16.mxu0 0
  %1229 = vmatmul.mubr.bf16.gmra.mxu0 %v1109
  %v1230 = vpop.f32.mrf.mxu0
  %v1231 = vadd.f32 %v1070, %v1230
  %v1232 = vpop.f32.mrf.mxu0
  %v1233 = vpop.f32.mrf.mxu0
  %v1234 = vadd.f32 %v1070, %v1233
  %v1235 = vpop.f32.mrf.mxu0
  %1236 = vmatprep.mubr.bf16.mxu0 0
  %1237 = vmatmul.mubr.bf16.gmra.mxu0 %v1112
  %v1238 = vpop.f32.mrf.mxu0
  %v1239 = vadd.f32 %v1070, %v1238
  %v1240 = vpop.f32.mrf.mxu0
  %v1241 = vpop.f32.mrf.mxu0
  %v1242 = vadd.f32 %v1070, %v1241
  %v1243 = vpop.f32.mrf.mxu0
  %1244 = vmatprep.mubr.bf16.mxu0 0
  %1245 = vmatmul.mubr.bf16.gmra.mxu0 %v1115
  %v1246 = vpop.f32.mrf.mxu0
  %v1247 = vadd.f32 %v1070, %v1246
  %v1248 = vpop.f32.mrf.mxu0
  %v1249 = vpop.f32.mrf.mxu0
  %v1250 = vadd.f32 %v1070, %v1249
  %v1251 = vpop.f32.mrf.mxu0
  %1252 = vmatprep.mubr.bf16.mxu0 0
  %1253 = vmatmul.mubr.bf16.gmra.mxu0 %v1118
  %v1254 = vpop.f32.mrf.mxu0
  %v1255 = vadd.f32 %v1070, %v1254
  %v1256 = vpop.f32.mrf.mxu0
  %v1257 = vpop.f32.mrf.mxu0
  %v1258 = vadd.f32 %v1070, %v1257
  %v1259 = vpop.f32.mrf.mxu0
  %1260 = vmatprep.mubr.bf16.mxu0 0
  %1261 = vmatmul.mubr.bf16.gmra.mxu0 %v1121
  %v1262 = vpop.f32.mrf.mxu0
  %v1263 = vadd.f32 %v1070, %v1262
  %v1264 = vpop.f32.mrf.mxu0
  %v1265 = vpop.f32.mrf.mxu0
  %v1266 = vadd.f32 %v1070, %v1265
  %v1267 = vpop.f32.mrf.mxu0
  %1268 = vmatprep.mubr.bf16.mxu0 0
  %1269 = vmatmul.mubr.bf16.gmra.mxu0 %v1124
  %v1270 = vpop.f32.mrf.mxu0
  %v1271 = vadd.f32 %v1070, %v1270
  %v1272 = vpop.f32.mrf.mxu0
  %v1273 = vpop.f32.mrf.mxu0
  %v1274 = vadd.f32 %v1070, %v1273
  %v1275 = vpop.f32.mrf.mxu0
  %1276 = vmatprep.mubr.bf16.mxu0 0
  %1277 = vmatmul.mubr.bf16.gmra.mxu0 %v1127
  %v1278 = vpop.f32.mrf.mxu0
  %v1279 = vadd.f32 %v1070, %v1278
  %v1280 = vpop.f32.mrf.mxu0
  %v1281 = vpop.f32.mrf.mxu0
  %v1282 = vadd.f32 %v1070, %v1281
  %v1283 = vpop.f32.mrf.mxu0
  %1284 = vmatprep.mubr.bf16.mxu0 0
  %1285 = vmatmul.mubr.bf16.gmra.mxu0 %v1130
  %v1286 = vpop.f32.mrf.mxu0
  %v1287 = vadd.f32 %v1070, %v1286
  %v1288 = vpop.f32.mrf.mxu0
  %v1289 = vpop.f32.mrf.mxu0
  %v1290 = vadd.f32 %v1070, %v1289
  %v1291 = vpop.f32.mrf.mxu0
  %1292 = vdwg.mxu0
  %v1293 = vadd.f32 %v1167, 3.0
  %v1294 = vadd.f32 %v1170, 3.0
  %v1295 = vadd.f32 %v1175, 3.0
  %v1296 = vadd.f32 %v1178, 3.0
  %v1297 = vadd.f32 %v1183, 3.0
  %v1298 = vadd.f32 %v1186, 3.0
  %v1299 = vadd.f32 %v1191, 3.0
  %v1300 = vadd.f32 %v1194, 3.0
  %v1301 = vadd.f32 %v1199, 3.0
  %v1302 = vadd.f32 %v1202, 3.0
  %v1303 = vadd.f32 %v1207, 3.0
  %v1304 = vadd.f32 %v1210, 3.0
  %v1305 = vadd.f32 %v1215, 3.0
  %v1306 = vadd.f32 %v1218, 3.0
  %v1307 = vadd.f32 %v1223, 3.0
  %v1308 = vadd.f32 %v1226, 3.0
  %v1309 = vadd.f32 %v1231, 3.0
  %v1310 = vadd.f32 %v1234, 3.0
  %v1311 = vadd.f32 %v1239, 3.0
  %v1312 = vadd.f32 %v1242, 3.0
  %v1313 = vadd.f32 %v1247, 3.0
  %v1314 = vadd.f32 %v1250, 3.0
  %v1315 = vadd.f32 %v1255, 3.0
  %v1316 = vadd.f32 %v1258, 3.0
  %v1317 = vadd.f32 %v1263, 3.0
  %v1318 = vadd.f32 %v1266, 3.0
  %v1319 = vadd.f32 %v1271, 3.0
  %v1320 = vadd.f32 %v1274, 3.0
  %v1321 = vadd.f32 %v1279, 3.0
  %v1322 = vadd.f32 %v1282, 3.0
  %v1323 = vadd.f32 %v1287, 3.0
  %v1324 = vadd.f32 %v1290, 3.0
  %v1325 = vmax.f32 %v1293, 0.0
  %v1326 = vmax.f32 %v1294, 0.0
  %v1327 = vmax.f32 %v1295, 0.0
  %v1328 = vmax.f32 %v1296, 0.0
  %v1329 = vmax.f32 %v1297, 0.0
  %v1330 = vmax.f32 %v1298, 0.0
  %v1331 = vmax.f32 %v1299, 0.0
  %v1332 = vmax.f32 %v1300, 0.0
  %v1333 = vmax.f32 %v1301, 0.0
  %v1334 = vmax.f32 %v1302, 0.0
  %v1335 = vmax.f32 %v1303, 0.0
  %v1336 = vmax.f32 %v1304, 0.0
  %v1337 = vmax.f32 %v1305, 0.0
  %v1338 = vmax.f32 %v1306, 0.0
  %v1339 = vmax.f32 %v1307, 0.0
  %v1340 = vmax.f32 %v1308, 0.0
  %v1341 = vmax.f32 %v1309, 0.0
  %v1342 = vmax.f32 %v1310, 0.0
  %v1343 = vmax.f32 %v1311, 0.0
  %v1344 = vmax.f32 %v1312, 0.0
  %v1345 = vmax.f32 %v1313, 0.0
  %v1346 = vmax.f32 %v1314, 0.0
  %v1347 = vmax.f32 %v1315, 0.0
  %v1348 = vmax.f32 %v1316, 0.0
  %v1349 = vmax.f32 %v1317, 0.0
  %v1350 = vmax.f32 %v1318, 0.0
  %v1351 = vmax.f32 %v1319, 0.0
  %v1352 = vmax.f32 %v1320, 0.0
  %v1353 = vmax.f32 %v1321, 0.0
  %v1354 = vmax.f32 %v1322, 0.0
  %v1355 = vmax.f32 %v1323, 0.0
  %v1356 = vmax.f32 %v1324, 0.0
  %v1357 = vmin.f32 %v1325, 6.0
  %v1358 = vmin.f32 %v1326, 6.0
  %v1359 = vmin.f32 %v1327, 6.0
  %v1360 = vmin.f32 %v1328, 6.0
  %v1361 = vmin.f32 %v1329, 6.0
  %v1362 = vmin.f32 %v1330, 6.0
  %v1363 = vmin.f32 %v1331, 6.0
  %v1364 = vmin.f32 %v1332, 6.0
  %v1365 = vmin.f32 %v1333, 6.0
  %v1366 = vmin.f32 %v1334, 6.0
  %v1367 = vmin.f32 %v1335, 6.0
  %v1368 = vmin.f32 %v1336, 6.0
  %v1369 = vmin.f32 %v1337, 6.0
  %v1370 = vmin.f32 %v1338, 6.0
  %v1371 = vmin.f32 %v1339, 6.0
  %v1372 = vmin.f32 %v1340, 6.0
  %v1373 = vmin.f32 %v1341, 6.0
  %v1374 = vmin.f32 %v1342, 6.0
  %v1375 = vmin.f32 %v1343, 6.0
  %v1376 = vmin.f32 %v1344, 6.0
  %v1377 = vmin.f32 %v1345, 6.0
  %v1378 = vmin.f32 %v1346, 6.0
  %v1379 = vmin.f32 %v1347, 6.0
  %v1380 = vmin.f32 %v1348, 6.0
  %v1381 = vmin.f32 %v1349, 6.0
  %v1382 = vmin.f32 %v1350, 6.0
  %v1383 = vmin.f32 %v1351, 6.0
  %v1384 = vmin.f32 %v1352, 6.0
  %v1385 = vmin.f32 %v1353, 6.0
  %v1386 = vmin.f32 %v1354, 6.0
  %v1387 = vmin.f32 %v1355, 6.0
  %v1388 = vmin.f32 %v1356, 6.0
  %v1389 = vmul.f32 %v1167, %v1357
  %v1390 = vmul.f32 %v1170, %v1358
  %v1391 = vmul.f32 %v1175, %v1359
  %v1392 = vmul.f32 %v1178, %v1360
  %v1393 = vmul.f32 %v1183, %v1361
  %v1394 = vmul.f32 %v1186, %v1362
  %v1395 = vmul.f32 %v1191, %v1363
  %v1396 = vmul.f32 %v1194, %v1364
  %v1397 = vmul.f32 %v1199, %v1365
  %v1398 = vmul.f32 %v1202, %v1366
  %v1399 = vmul.f32 %v1207, %v1367
  %v1400 = vmul.f32 %v1210, %v1368
  %v1401 = vmul.f32 %v1215, %v1369
  %v1402 = vmul.f32 %v1218, %v1370
  %v1403 = vmul.f32 %v1223, %v1371
  %v1404 = vmul.f32 %v1226, %v1372
  %v1405 = vmul.f32 %v1231, %v1373
  %v1406 = vmul.f32 %v1234, %v1374
  %v1407 = vmul.f32 %v1239, %v1375
  %v1408 = vmul.f32 %v1242, %v1376
  %v1409 = vmul.f32 %v1247, %v1377
  %v1410 = vmul.f32 %v1250, %v1378
  %v1411 = vmul.f32 %v1255, %v1379
  %v1412 = vmul.f32 %v1258, %v1380
  %v1413 = vmul.f32 %v1263, %v1381
  %v1414 = vmul.f32 %v1266, %v1382
  %v1415 = vmul.f32 %v1271, %v1383
  %v1416 = vmul.f32 %v1274, %v1384
  %v1417 = vmul.f32 %v1279, %v1385
  %v1418 = vmul.f32 %v1282, %v1386
  %v1419 = vmul.f32 %v1287, %v1387
  %v1420 = vmul.f32 %v1290, %v1388
  %v1421 = vmul.f32 %v1389, 0.16666667
  %v1422 = vmul.f32 %v1390, 0.16666667
  %v1423 = vmul.f32 %v1391, 0.16666667
  %v1424 = vmul.f32 %v1392, 0.16666667
  %v1425 = vmul.f32 %v1393, 0.16666667
  %v1426 = vmul.f32 %v1394, 0.16666667
  %v1427 = vmul.f32 %v1395, 0.16666667
  %v1428 = vmul.f32 %v1396, 0.16666667
  %v1429 = vmul.f32 %v1397, 0.16666667
  %v1430 = vmul.f32 %v1398, 0.16666667
  %v1431 = vmul.f32 %v1399, 0.16666667
  %v1432 = vmul.f32 %v1400, 0.16666667
  %v1433 = vmul.f32 %v1401, 0.16666667
  %v1434 = vmul.f32 %v1402, 0.16666667
  %v1435 = vmul.f32 %v1403, 0.16666667
  %v1436 = vmul.f32 %v1404, 0.16666667
  %v1437 = vmul.f32 %v1405, 0.16666667
  %v1438 = vmul.f32 %v1406, 0.16666667
  %v1439 = vmul.f32 %v1407, 0.16666667
  %v1440 = vmul.f32 %v1408, 0.16666667
  %v1441 = vmul.f32 %v1409, 0.16666667
  %v1442 = vmul.f32 %v1410, 0.16666667
  %v1443 = vmul.f32 %v1411, 0.16666667
  %v1444 = vmul.f32 %v1412, 0.16666667
  %v1445 = vmul.f32 %v1413, 0.16666667
  %v1446 = vmul.f32 %v1414, 0.16666667
  %v1447 = vmul.f32 %v1415, 0.16666667
  %v1448 = vmul.f32 %v1416, 0.16666667
  %v1449 = vmul.f32 %v1417, 0.16666667
  %v1450 = vmul.f32 %v1418, 0.16666667
  %v1451 = vmul.f32 %v1419, 0.16666667
  %v1452 = vmul.f32 %v1420, 0.16666667
  %v1453 = vpack.c.bf16 %v1422, %v1421
  %v1454 = vpack.c.bf16 %v1424, %v1423
  %v1455 = vpack.c.bf16 %v1426, %v1425
  %v1456 = vpack.c.bf16 %v1428, %v1427
  %v1457 = vpack.c.bf16 %v1430, %v1429
  %v1458 = vpack.c.bf16 %v1432, %v1431
  %v1459 = vpack.c.bf16 %v1434, %v1433
  %v1460 = vpack.c.bf16 %v1436, %v1435
  %v1461 = vpack.c.bf16 %v1438, %v1437
  %v1462 = vpack.c.bf16 %v1440, %v1439
  %v1463 = vpack.c.bf16 %v1442, %v1441
  %v1464 = vpack.c.bf16 %v1444, %v1443
  %v1465 = vpack.c.bf16 %v1446, %v1445
  %v1466 = vpack.c.bf16 %v1448, %v1447
  %v1467 = vpack.c.bf16 %v1450, %v1449
  %v1468 = vpack.c.bf16 %v1452, %v1451
  %v1469 = vld [vmem:[%s9] sm:$0xf]
  %v1470 = vld [vmem:[%s9 + $0x4] sm:$0xf]
  %v1471 = vld [vmem:[%s9 + $0x8] sm:$0xf]
  %v1472 = vld [vmem:[%s9 + $0xc] sm:$0xf]
  %v1473 = vld [vmem:[%s9 + $0x10] sm:$0xf]
  %v1474 = vld [vmem:[%s9 + $0x14] sm:$0xf]
  %v1475 = vld [vmem:[%s9 + $0x18] sm:$0xf]
  %v1476 = vld [vmem:[%s9 + $0x1c] sm:$0xf]
  %v1477 = vld [vmem:[%s10] sm:$0x1]
  %v1479 = vlaneseq
  %v1480 = vshrl.u32 %v1479, 7
  %v1481 = vsub.s32 0, %v1480
  %v1482 = vrot.slane %v1477, %v1481
  %v1492 = vunpack.c.l.b16 %v1469
  %v1493 = vunpack.c.l.b16 %v1470
  %v1494 = vunpack.c.l.b16 %v1471
  %v1495 = vunpack.c.l.b16 %v1472
  %v1496 = vunpack.c.l.b16 %v1473
  %v1497 = vunpack.c.l.b16 %v1474
  %v1498 = vunpack.c.l.b16 %v1475
  %v1499 = vunpack.c.l.b16 %v1476
  %v1500 = vpack.c.b16 %v1493, %v1492
  %v1501 = vpack.c.b16 %v1495, %v1494
  %v1502 = vpack.c.b16 %v1497, %v1496
  %v1503 = vpack.c.b16 %v1499, %v1498
  %vm1508 = vcmask 523264
  %v1510 = vsel %vm1508, %v1453, 0
  %v1513 = vsel %vm1508, %v1454, 0
  %v1516 = vsel %vm1508, %v1455, 0
  %v1519 = vsel %vm1508, %v1456, 0
  %v1522 = vsel %vm1508, %v1457, 0
  %v1525 = vsel %vm1508, %v1458, 0
  %v1528 = vsel %vm1508, %v1459, 0
  %v1531 = vsel %vm1508, %v1460, 0
  %v1534 = vsel %vm1508, %v1461, 0
  %v1537 = vsel %vm1508, %v1462, 0
  %v1540 = vsel %vm1508, %v1463, 0
  %v1543 = vsel %vm1508, %v1464, 0
  %v1546 = vsel %vm1508, %v1465, 0
  %v1549 = vsel %vm1508, %v1466, 0
  %v1552 = vsel %vm1508, %v1467, 0
  %v1555 = vsel %vm1508, %v1468, 0
  %1557 = vmatprep.subr.bf16.mxu0 0
  %1558 = vmatpush1.bf16.msra.mxu0 0
  %1559 = vmatprep.subr.bf16.mxu0 0
  %1560 = vmatpush1.bf16.msra.mxu0 0
  %1561 = vmatprep.subr.bf16.mxu0 0
  %1562 = vmatpush1.bf16.msra.mxu0 0
  %1563 = vmatprep.subr.bf16.mxu0 0
  %1564 = vmatpush1.bf16.msra.mxu0 0
  %1565 = vmatprep.subr.bf16.mxu0 0
  %1566 = vmatpush1.bf16.msra.mxu0 %v1503
  %1567 = vmatprep.subr.bf16.mxu0 0
  %1568 = vmatpush1.bf16.msra.mxu0 %v1502
  %1569 = vmatprep.subr.bf16.mxu0 0
  %1570 = vmatpush1.bf16.msra.mxu0 %v1501
  %1571 = vmatprep.subr.bf16.mxu0 0
  %1572 = vmatpush1.bf16.msra.mxu0 %v1500
  %1573 = vmatprep.subr.bf16.mxu0 0
  %1574 = vmatpush2.bf16.msra.mxu0 0
  %1575 = vmatprep.subr.bf16.mxu0 0
  %1576 = vmatpush2.bf16.msra.mxu0 0
  %1577 = vmatprep.subr.bf16.mxu0 0
  %1578 = vmatpush2.bf16.msra.mxu0 0
  %1579 = vmatprep.subr.bf16.mxu0 0
  %1580 = vmatpush2.bf16.msra.mxu0 0
  %1581 = vmatprep.subr.bf16.mxu0 0
  %1582 = vmatpush2.bf16.msra.mxu0 0
  %1583 = vmatprep.subr.bf16.mxu0 0
  %1584 = vmatpush2.bf16.msra.mxu0 0
  %1585 = vmatprep.subr.bf16.mxu0 0
  %1586 = vmatpush2.bf16.msra.mxu0 0
  %1587 = vmatprep.subr.bf16.mxu0 0
  %1588 = vmatpush2.bf16.msra.mxu0 0
  %1589 = vmatprep.mubr.bf16.mxu0 0
  %1590 = vmatmul.mubr.bf16.gmra.mxu0 %v1510
  %v1591 = vpop.f32.mrf.mxu0
  %v1592 = vadd.f32 %v1482, %v1591
  %v1593 = vpop.f32.mrf.mxu0
  %v1594 = vpop.f32.mrf.mxu0
  %v1595 = vadd.f32 %v1482, %v1594
  %v1596 = vpop.f32.mrf.mxu0
  %1597 = vmatprep.mubr.bf16.mxu0 0
  %1598 = vmatmul.mubr.bf16.gmra.mxu0 %v1513
  %v1599 = vpop.f32.mrf.mxu0
  %v1600 = vadd.f32 %v1482, %v1599
  %v1601 = vpop.f32.mrf.mxu0
  %v1602 = vpop.f32.mrf.mxu0
  %v1603 = vadd.f32 %v1482, %v1602
  %v1604 = vpop.f32.mrf.mxu0
  %1605 = vmatprep.mubr.bf16.mxu0 0
  %1606 = vmatmul.mubr.bf16.gmra.mxu0 %v1516
  %v1607 = vpop.f32.mrf.mxu0
  %v1608 = vadd.f32 %v1482, %v1607
  %v1609 = vpop.f32.mrf.mxu0
  %v1610 = vpop.f32.mrf.mxu0
  %v1611 = vadd.f32 %v1482, %v1610
  %v1612 = vpop.f32.mrf.mxu0
  %1613 = vmatprep.mubr.bf16.mxu0 0
  %1614 = vmatmul.mubr.bf16.gmra.mxu0 %v1519
  %v1615 = vpop.f32.mrf.mxu0
  %v1616 = vadd.f32 %v1482, %v1615
  %v1617 = vpop.f32.mrf.mxu0
  %v1618 = vpop.f32.mrf.mxu0
  %v1619 = vadd.f32 %v1482, %v1618
  %v1620 = vpop.f32.mrf.mxu0
  %1621 = vmatprep.mubr.bf16.mxu0 0
  %1622 = vmatmul.mubr.bf16.gmra.mxu0 %v1522
  %v1623 = vpop.f32.mrf.mxu0
  %v1624 = vadd.f32 %v1482, %v1623
  %v1625 = vpop.f32.mrf.mxu0
  %v1626 = vpop.f32.mrf.mxu0
  %v1627 = vadd.f32 %v1482, %v1626
  %v1628 = vpop.f32.mrf.mxu0
  %1629 = vmatprep.mubr.bf16.mxu0 0
  %1630 = vmatmul.mubr.bf16.gmra.mxu0 %v1525
  %v1631 = vpop.f32.mrf.mxu0
  %v1632 = vadd.f32 %v1482, %v1631
  %v1633 = vpop.f32.mrf.mxu0
  %v1634 = vpop.f32.mrf.mxu0
  %v1635 = vadd.f32 %v1482, %v1634
  %v1636 = vpop.f32.mrf.mxu0
  %1637 = vmatprep.mubr.bf16.mxu0 0
  %1638 = vmatmul.mubr.bf16.gmra.mxu0 %v1528
  %v1639 = vpop.f32.mrf.mxu0
  %v1640 = vadd.f32 %v1482, %v1639
  %v1641 = vpop.f32.mrf.mxu0
  %v1642 = vpop.f32.mrf.mxu0
  %v1643 = vadd.f32 %v1482, %v1642
  %v1644 = vpop.f32.mrf.mxu0
  %1645 = vmatprep.mubr.bf16.mxu0 0
  %1646 = vmatmul.mubr.bf16.gmra.mxu0 %v1531
  %v1647 = vpop.f32.mrf.mxu0
  %v1648 = vadd.f32 %v1482, %v1647
  %v1649 = vpop.f32.mrf.mxu0
  %v1650 = vpop.f32.mrf.mxu0
  %v1651 = vadd.f32 %v1482, %v1650
  %v1652 = vpop.f32.mrf.mxu0
  %1653 = vmatprep.mubr.bf16.mxu0 0
  %1654 = vmatmul.mubr.bf16.gmra.mxu0 %v1534
  %v1655 = vpop.f32.mrf.mxu0
  %v1656 = vadd.f32 %v1482, %v1655
  %v1657 = vpop.f32.mrf.mxu0
  %v1658 = vpop.f32.mrf.mxu0
  %v1659 = vadd.f32 %v1482, %v1658
  %v1660 = vpop.f32.mrf.mxu0
  %1661 = vmatprep.mubr.bf16.mxu0 0
  %1662 = vmatmul.mubr.bf16.gmra.mxu0 %v1537
  %v1663 = vpop.f32.mrf.mxu0
  %v1664 = vadd.f32 %v1482, %v1663
  %v1665 = vpop.f32.mrf.mxu0
  %v1666 = vpop.f32.mrf.mxu0
  %v1667 = vadd.f32 %v1482, %v1666
  %v1668 = vpop.f32.mrf.mxu0
  %1669 = vmatprep.mubr.bf16.mxu0 0
  %1670 = vmatmul.mubr.bf16.gmra.mxu0 %v1540
  %v1671 = vpop.f32.mrf.mxu0
  %v1672 = vadd.f32 %v1482, %v1671
  %v1673 = vpop.f32.mrf.mxu0
  %v1674 = vpop.f32.mrf.mxu0
  %v1675 = vadd.f32 %v1482, %v1674
  %v1676 = vpop.f32.mrf.mxu0
  %1677 = vmatprep.mubr.bf16.mxu0 0
  %1678 = vmatmul.mubr.bf16.gmra.mxu0 %v1543
  %v1679 = vpop.f32.mrf.mxu0
  %v1680 = vadd.f32 %v1482, %v1679
  %v1681 = vpop.f32.mrf.mxu0
  %v1682 = vpop.f32.mrf.mxu0
  %v1683 = vadd.f32 %v1482, %v1682
  %v1684 = vpop.f32.mrf.mxu0
  %1685 = vmatprep.mubr.bf16.mxu0 0
  %1686 = vmatmul.mubr.bf16.gmra.mxu0 %v1546
  %v1687 = vpop.f32.mrf.mxu0
  %v1688 = vadd.f32 %v1482, %v1687
  %v1689 = vpop.f32.mrf.mxu0
  %v1690 = vpop.f32.mrf.mxu0
  %v1691 = vadd.f32 %v1482, %v1690
  %v1692 = vpop.f32.mrf.mxu0
  %1693 = vmatprep.mubr.bf16.mxu0 0
  %1694 = vmatmul.mubr.bf16.gmra.mxu0 %v1549
  %v1695 = vpop.f32.mrf.mxu0
  %v1696 = vadd.f32 %v1482, %v1695
  %v1697 = vpop.f32.mrf.mxu0
  %v1698 = vpop.f32.mrf.mxu0
  %v1699 = vadd.f32 %v1482, %v1698
  %v1700 = vpop.f32.mrf.mxu0
  %1701 = vmatprep.mubr.bf16.mxu0 0
  %1702 = vmatmul.mubr.bf16.gmra.mxu0 %v1552
  %v1703 = vpop.f32.mrf.mxu0
  %v1704 = vadd.f32 %v1482, %v1703
  %v1705 = vpop.f32.mrf.mxu0
  %v1706 = vpop.f32.mrf.mxu0
  %v1707 = vadd.f32 %v1482, %v1706
  %v1708 = vpop.f32.mrf.mxu0
  %1709 = vmatprep.mubr.bf16.mxu0 0
  %1710 = vmatmul.mubr.bf16.gmra.mxu0 %v1555
  %v1711 = vpop.f32.mrf.mxu0
  %v1712 = vadd.f32 %v1482, %v1711
  %v1713 = vpop.f32.mrf.mxu0
  %v1714 = vpop.f32.mrf.mxu0
  %v1715 = vadd.f32 %v1482, %v1714
  %v1716 = vpop.f32.mrf.mxu0
  %1717 = vdwg.mxu0
  %vm1718 = vcmask 15360
  %1719 = vst.msk [vmem:[%s11] sm:$0xff] %vm1718, %v1592
  %1720 = vst.msk [vmem:[%s11 + $0x8] sm:$0xff] %vm1718, %v1595
  %1721 = vst.msk [vmem:[%s11 + $0x10] sm:$0xff] %vm1718, %v1600
  %1722 = vst.msk [vmem:[%s11 + $0x18] sm:$0xff] %vm1718, %v1603
  %1723 = vst.msk [vmem:[%s11 + $0x20] sm:$0xff] %vm1718, %v1608
  %1724 = vst.msk [vmem:[%s11 + $0x28] sm:$0xff] %vm1718, %v1611
  %1725 = vst.msk [vmem:[%s11 + $0x30] sm:$0xff] %vm1718, %v1616
  %1726 = vst.msk [vmem:[%s11 + $0x38] sm:$0xff] %vm1718, %v1619
  %1727 = vst.msk [vmem:[%s11 + $0x40] sm:$0xff] %vm1718, %v1624
  %1728 = vst.msk [vmem:[%s11 + $0x48] sm:$0xff] %vm1718, %v1627
  %1729 = vst.msk [vmem:[%s11 + $0x50] sm:$0xff] %vm1718, %v1632
  %1730 = vst.msk [vmem:[%s11 + $0x58] sm:$0xff] %vm1718, %v1635
  %1731 = vst.msk [vmem:[%s11 + $0x60] sm:$0xff] %vm1718, %v1640
  %1732 = vst.msk [vmem:[%s11 + $0x68] sm:$0xff] %vm1718, %v1643
  %1733 = vst.msk [vmem:[%s11 + $0x70] sm:$0xff] %vm1718, %v1648
  %1734 = vst.msk [vmem:[%s11 + $0x78] sm:$0xff] %vm1718, %v1651
  %1735 = vst.msk [vmem:[%s11 + $0x80] sm:$0xff] %vm1718, %v1656
  %1736 = vst.msk [vmem:[%s11 + $0x88] sm:$0xff] %vm1718, %v1659
  %1737 = vst.msk [vmem:[%s11 + $0x90] sm:$0xff] %vm1718, %v1664
  %1738 = vst.msk [vmem:[%s11 + $0x98] sm:$0xff] %vm1718, %v1667
  %1739 = vst.msk [vmem:[%s11 + $0xa0] sm:$0xff] %vm1718, %v1672
  %1740 = vst.msk [vmem:[%s11 + $0xa8] sm:$0xff] %vm1718, %v1675
  %1741 = vst.msk [vmem:[%s11 + $0xb0] sm:$0xff] %vm1718, %v1680
  %1742 = vst.msk [vmem:[%s11 + $0xb8] sm:$0xff] %vm1718, %v1683
  %1743 = vst.msk [vmem:[%s11 + $0xc0] sm:$0xff] %vm1718, %v1688
  %1744 = vst.msk [vmem:[%s11 + $0xc8] sm:$0xff] %vm1718, %v1691
  %1745 = vst.msk [vmem:[%s11 + $0xd0] sm:$0xff] %vm1718, %v1696
  %1746 = vst.msk [vmem:[%s11 + $0xd8] sm:$0xff] %vm1718, %v1699
  %1747 = vst.msk [vmem:[%s11 + $0xe0] sm:$0xff] %vm1718, %v1704
  %1748 = vst.msk [vmem:[%s11 + $0xe8] sm:$0xff] %vm1718, %v1707
  %1749 = vst.msk [vmem:[%s11 + $0xf0] sm:$0xff] %vm1718, %v1712
  %1750 = vst.msk [vmem:[%s11 + $0xf8] sm:$0xff] %vm1718, %v1715
  // Predicated region
  $region46: #{critic_twin_forward.1} parent=0 // pred_check
    _
  $region47: #{critic_twin_forward.1} parent=0 // pred_check_branch
    %1752 = sbr.rel (0) target = $region49
  $region48: #{critic_twin_forward.1} parent=0 // pred_region
    _
  $region49: #{critic_twin_forward.1} parent=0 // pred_fallthru
    _
  // Predicated region
  $region50: #{critic_twin_forward.1} parent=0 // pred_check
    _
  $region51: #{critic_twin_forward.1} parent=0 // pred_check_branch
    %1754 = sbr.rel (0) target = $region53
  $region52: #{critic_twin_forward.1} parent=0 // pred_region
    _
  $region53: #{critic_twin_forward.1} parent=0 // pred_fallthru
    _

</llo_original>
